<compile_context>
chip_gen: v5e
topology: v5e:2x2
jax: 0.10.0
libtpu: 0.0.40
codegen_flags: <defaults>
</compile_context>

<pallas_src>
import functools

import jax
import jax.numpy as jnp
import numpy as np
from jax import lax
from jax.experimental import pallas as pl
from jax.experimental.pallas import tpu as pltpu


# -----------------------------------------------------------------------------
# Shared conv2(3x3) + conv3(1x1) helper over a padded flat-pixel window.
# -----------------------------------------------------------------------------
def _conv2_conv3(ywin, w2, b2, w3, b3, *, W, n_out, out_start, col_offset):
    """ywin: (Nwin, P) bf16 conv1 activations over consecutive flat pixels,
    with rows outside the image already zeroed.  Window row i has image column
    (i + col_offset) % W.  Returns z = conv3(relu(conv2_3x3(y))) + b3 as f32
    for the n_out output rows whose centre taps start at window row out_start.

    The 3x3 conv is one im2col matmul (n_out, 9P) @ (9P, P).  Column validity
    uses two pre-masked bf16 copies of the window instead of per-tap masks.
    (On v5e the bf16 selects could be kept in f32; correctness is identical.)
    """
    Nwin, P = ywin.shape
    col = (lax.broadcasted_iota(jnp.int32, (Nwin, 1), 0) + col_offset) % W
    zero = jnp.zeros((), ywin.dtype)
    y_km1 = jnp.where(col != W - 1, ywin, zero)   # taps with kx-1 == -1
    y_kp1 = jnp.where(col != 0, ywin, zero)       # taps with kx-1 == +1
    variants = (y_km1, ywin, y_kp1)

    taps = []
    for ky in range(3):
        for kx in range(3):
            s = out_start + (ky - 1) * W + (kx - 1)      # static python int
            taps.append(lax.slice(variants[kx], (s, 0), (s + n_out, P)))
    patches = jnp.concatenate(taps, axis=-1)             # (n_out, 9P) bf16

    y2 = jnp.dot(patches, w2, preferred_element_type=jnp.float32)
    y2 = jnp.maximum(y2 + b2, 0.0)                       # (n_out, P) f32
    z = jnp.dot(y2.astype(jnp.bfloat16), w3, preferred_element_type=jnp.float32)
    return z + b3                                        # (n_out, C2) f32


# -----------------------------------------------------------------------------
# Fused whole-image-per-batch kernel (conv1/conv2/conv3 + SE + residual).
# -----------------------------------------------------------------------------
def _se_fused_kernel(H, W, x_ref, w1_ref, b1_ref, w2_ref, b2_ref,
                     w3_ref, b3_ref, wse1_ref, wse2_ref, out_ref):
    HW = H * W
    x = x_ref[0]                                                  # (HW, Cin) bf16

    # conv1 (1x1, BN folded) + bias + relu; cast to bf16 before the im2col slab.
    y = jnp.dot(x, w1_ref[...], preferred_element_type=jnp.float32)
    y = jnp.maximum(y + b1_ref[...], 0.0).astype(jnp.bfloat16)    # (HW, P)
    P = y.shape[-1]

    # conv2 (3x3, stride 1, pad 1) + conv3 (1x1) via the shared helper.
    pad = jnp.zeros((W + 1, P), jnp.bfloat16)
    ywin = jnp.concatenate([pad, y, pad], axis=0)                 # (HW+2W+2, P)
    z = _conv2_conv3(ywin, w2_ref[...], b2_ref[...], w3_ref[...], b3_ref[...],
                     W=W, n_out=HW, out_start=W + 1, col_offset=-(W + 1))

    # SE: 1/HW is folded into wse1, so pool with a plain sum.
    pooled = jnp.sum(z, axis=0, keepdims=True)                    # (1, C2) f32
    hdn = jnp.maximum(
        jnp.dot(pooled.astype(jnp.bfloat16), wse1_ref[...],
                preferred_element_type=jnp.float32), 0.0)
    gate = jax.nn.sigmoid(
        jnp.dot(hdn.astype(jnp.bfloat16), wse2_ref[...],
                preferred_element_type=jnp.float32))              # (1, C2) f32

    out_ref[0] = jnp.maximum(z * gate + x.astype(jnp.float32),
                             0.0).astype(out_ref.dtype)


# -----------------------------------------------------------------------------
# Two-pass HW-tiled kernels (for large images / v7x 64 MiB VMEM).
# -----------------------------------------------------------------------------
def _se_pre_kernel(H, W, tile, x_ref, xh_ref, w1_ref, b1_ref, w2_ref, b2_ref,
                   w3_ref, b3_ref, z_ref, pooled_ref):
    """Pass 1: per (batch, HW-tile) compute z = conv3(relu(conv2(relu(conv1))))
    and accumulate the SE pooled sums into a resident (1,1,C2) output block."""
    HW = H * W
    Wp = W + 1
    t = pl.program_id(1)

    halo = xh_ref[...].reshape(2 * Wp, -1)                        # (2Wp, Cin) bf16
    xwin = jnp.concatenate([halo[:Wp], x_ref[0], halo[Wp:]], axis=0)

    y = jnp.dot(xwin, w1_ref[...], preferred_element_type=jnp.float32)
    y = jnp.maximum(y + b1_ref[...], 0.0)
    # Zero window rows that fall outside the image (relu(b1) != 0 for pad x).
    flat = lax.broadcasted_iota(jnp.int32, (tile + 2 * Wp, 1), 0) + (t * tile - Wp)
    y = jnp.where((flat >= 0) & (flat < HW), y, 0.0).astype(jnp.bfloat16)

    z = _conv2_conv3(y, w2_ref[...], b2_ref[...], w3_ref[...], b3_ref[...],
                     W=W, n_out=tile, out_start=Wp, col_offset=t * tile - Wp)
    z_ref[0] = z.astype(z_ref.dtype)

    @pl.when(t == 0)
    def _():
        pooled_ref[...] = jnp.zeros_like(pooled_ref)
    pooled_ref[...] += jnp.sum(z, axis=0).reshape(1, 1, -1)


def _se_post_kernel(z_ref, x_ref, gate_ref, out_ref):
    """Pass 2: out = relu(z * gate + residual), pointwise per tile."""
    z = z_ref[0].astype(jnp.float32)
    g = gate_ref[...].reshape(1, -1)                              # (1, C2) f32
    x = x_ref[0].astype(jnp.float32)
    out_ref[0] = jnp.maximum(z * g + x, 0.0).astype(out_ref.dtype)


# -----------------------------------------------------------------------------
# VMEM budgeting helpers.
# -----------------------------------------------------------------------------
def _vmem_cap_bytes():
    try:
        return int(pltpu.get_tpu_info().vmem_capacity_bytes)
    except Exception:
        return 128 * 1024 * 1024


def _vmem_limit(est_bytes, cap):
    # Estimated footprint + headroom, never the entire physical VMEM (leave
    # room for Mosaic internal scratch / semaphores / double buffers).
    want = int(est_bytes * 1.5) + 16 * 1024 * 1024
    return int(max(32 * 1024 * 1024, min(want, int(cap * 0.85))))


def _fused_vmem_estimate(HW, W, Cin, P, C2, w_bytes):
    win = HW + 2 * W + 2
    io = 2 * HW * Cin * 2 + 2 * HW * C2 * 2            # double-buffered in/out (bf16)
    inter = (3 * win * P * 2                            # padded y + 2 masked copies
             + HW * 9 * P * 2                           # im2col slab (bf16)
             + HW * P * 4                               # conv2 result f32
             + 2 * HW * C2 * 4)                         # z f32 (+ epilogue slack)
    return io + 2 * w_bytes + inter


def _tiled_vmem_estimate(tile, W, Cin, P, C2, w_bytes):
    wp = W + 1
    win = tile + 2 * wp
    io = 2 * tile * Cin * 2 + 4 * wp * Cin * 2 + 2 * tile * C2 * 2 + 2 * C2 * 4
    inter = (win * Cin * 2 + win * P * 4 + 3 * win * P * 2
             + tile * 9 * P * 2 + tile * P * 4 + 2 * tile * C2 * 4)
    return io + 2 * w_bytes + inter


def _auto_tile(HW, W, Cin, P, C2, w_bytes, cap):
    budget = int(cap * 0.55)
    if _fused_vmem_estimate(HW, W, Cin, P, C2, w_bytes) <= budget:
        return 0
    start = min(4096, ((HW // 2) // 8) * 8)
    for tile in range(start, 7, -8):
        if HW % tile == 0 and \
           _tiled_vmem_estimate(tile, W, Cin, P, C2, w_bytes) <= budget:
            return tile
    return 0                                            # fall back to whole image


# -----------------------------------------------------------------------------
# pallas_call wrappers.
# -----------------------------------------------------------------------------
def _call_fused(x_flat, kp, H, W, cap, w_bytes):
    B, HW, Cin = x_flat.shape
    P = kp["w1"].shape[1]
    C2 = 4 * P
    hidden = kp["wse1"].shape[1]

    kernel = functools.partial(_se_fused_kernel, H, W)
    args = (x_flat, kp["w1"], kp["b1"], kp["w2"], kp["b2"], kp["w3"], kp["b3"],
            kp["wse1"], kp["wse2"])

    def const_spec(a):
        nd = a.ndim
        return pl.BlockSpec(a.shape, lambda b, _nd=nd: (0,) * _nd)

    in_specs = [pl.BlockSpec((1, HW, Cin), lambda b: (b, 0, 0))]
    in_specs += [const_spec(a) for a in args[1:]]

    flops = 2 * B * HW * (Cin * P + 9 * P * P + P * C2) + 4 * B * C2 * hidden
    cost = pl.CostEstimate(flops=int(flops), transcendentals=int(B * C2),
                           bytes_accessed=int(B * HW * (Cin + C2) * 2 + w_bytes))
    limit = _vmem_limit(_fused_vmem_estimate(HW, W, Cin, P, C2, w_bytes), cap)

    return pl.pallas_call(
        kernel,
        out_shape=jax.ShapeDtypeStruct((B, HW, C2), jnp.bfloat16),
        grid=(B,),
        in_specs=in_specs,
        out_specs=pl.BlockSpec((1, HW, C2), lambda b: (b, 0, 0)),
        compiler_params=pltpu.CompilerParams(
            dimension_semantics=("parallel",),
            vmem_limit_bytes=limit),
        cost_estimate=cost,
    )(*args)


def _build_halos(x_flat, tile, wp):
    """(B, n_tiles, 2*wp, C): wp rows above and below each tile (zero-padded)."""
    B, HW, C = x_flat.shape
    n_tiles = HW // tile
    zeros = jnp.zeros((B, wp, C), x_flat.dtype)
    xp = jnp.concatenate([zeros, x_flat, zeros], axis=1)          # (B, HW+2wp, C)
    halos = []
    for t in range(n_tiles):
        top = xp[:, t * tile: t * tile + wp]
        bot = xp[:, wp + (t + 1) * tile: wp + (t + 1) * tile + wp]
        halos.append(jnp.concatenate([top, bot], axis=1))
    return jnp.stack(halos, axis=1)


def _call_tiled(x_flat, kp, H, W, tile, cap, w_bytes):
    B, HW, Cin = x_flat.shape
    P = kp["w1"].shape[1]
    C2 = 4 * P
    Wp = W + 1
    n_tiles = HW // tile
    halos = _build_halos(x_flat, tile, Wp)                        # (B,n_tiles,2Wp,Cin)

    pre_kernel = functools.partial(_se_pre_kernel, H, W, tile)
    args = (x_flat, halos, kp["w1"], kp["b1"], kp["w2"], kp["b2"],
            kp["w3"], kp["b3"])

    def const_spec(a):
        nd = a.ndim
        return pl.BlockSpec(a.shape, lambda b, t, _nd=nd: (0,) * _nd)

    in_specs = [pl.BlockSpec((1, tile, Cin), lambda b, t: (b, t, 0)),
                pl.BlockSpec((1, 1, 2 * Wp, Cin), lambda b, t: (b, t, 0, 0))]
    in_specs += [const_spec(a) for a in args[2:]]

    limit1 = _vmem_limit(_tiled_vmem_estimate(tile, W, Cin, P, C2, w_bytes), cap)
    flops1 = 2 * B * HW * (Cin * P + 9 * P * P + P * C2)
    cost1 = pl.CostEstimate(
        flops=int(flops1), transcendentals=0,
        bytes_accessed=int(B * HW * (Cin + C2) * 2 + halos.size * 2 + w_bytes))

    z, pooled = pl.pallas_call(
        pre_kernel,
        out_shape=(jax.ShapeDtypeStruct((B, HW, C2), jnp.bfloat16),
                   jax.ShapeDtypeStruct((B, 1, C2), jnp.float32)),
        grid=(B, n_tiles),
        in_specs=in_specs,
        out_specs=(pl.BlockSpec((1, tile, C2), lambda b, t: (b, t, 0)),
                   pl.BlockSpec((1, 1, C2), lambda b, t: (b, 0, 0))),
        compiler_params=pltpu.CompilerParams(
            dimension_semantics=("parallel", "arbitrary"),
            vmem_limit_bytes=limit1),
        cost_estimate=cost1,
    )(*args)

    # SE excitation (tiny (B, C2) FCs) between the passes in plain XLA --
    # keeps the MXU drain/refill bubble off the per-tile critical path.
    hdn = jax.nn.relu(jnp.dot(pooled[:, 0, :].astype(jnp.bfloat16), kp["wse1"],
                              preferred_element_type=jnp.float32))
    gate = jax.nn.sigmoid(jnp.dot(hdn.astype(jnp.bfloat16), kp["wse2"],
                                  preferred_element_type=jnp.float32))
    gate = gate.reshape(B, 1, C2).astype(jnp.float32)

    cost2 = pl.CostEstimate(flops=int(3 * B * HW * C2), transcendentals=0,
                            bytes_accessed=int(B * HW * (2 * C2 + Cin) * 2))
    out = pl.pallas_call(
        _se_post_kernel,
        out_shape=jax.ShapeDtypeStruct((B, HW, C2), jnp.bfloat16),
        grid=(B, n_tiles),
        in_specs=[pl.BlockSpec((1, tile, C2), lambda b, t: (b, t, 0)),
                  pl.BlockSpec((1, tile, Cin), lambda b, t: (b, t, 0)),
                  pl.BlockSpec((1, 1, C2), lambda b, t: (b, 0, 0))],
        out_specs=pl.BlockSpec((1, tile, C2), lambda b, t: (b, t, 0)),
        compiler_params=pltpu.CompilerParams(
            dimension_semantics=("parallel", "parallel"),
            vmem_limit_bytes=_vmem_limit(16 * tile * C2, cap)),
        cost_estimate=cost2,
    )(z, x_flat, gate)
    return out


def se_bottleneck(x_nhwc, kparams, *, tile_hw=None):
    """x_nhwc: (B, H, W, Cin) with Cin == planes*4 (stride=1, downsample=None).
    kparams: BN-folded bf16 weights + f32 biases from `fold_params`.
    tile_hw: None = auto-select, 0 = force whole-image-per-step path, else a
    multiple of 8 dividing H*W selecting the two-pass HW-tiled path."""
    B, H, W, Cin = x_nhwc.shape
    assert W >= 2, "flat-pixel im2col requires W >= 2"
    P = kparams["w1"].shape[1]
    C2 = 4 * P
    assert Cin == C2, "downsample=None requires inplanes == planes * 4"
    HW = H * W
    x_flat = x_nhwc.reshape(B, HW, Cin).astype(jnp.bfloat16)

    cap = _vmem_cap_bytes()
    w_names = ("w1", "b1", "w2", "b2", "w3", "b3", "wse1", "wse2")
    w_bytes = sum(int(np.prod(kparams[n].shape)) * kparams[n].dtype.itemsize
                  for n in w_names)

    if tile_hw is None:
        tile_hw = _auto_tile(HW, W, Cin, P, C2, w_bytes, cap)
    if not tile_hw or tile_hw >= HW:
        out = _call_fused(x_flat, kparams, H, W, cap, w_bytes)
    else:
        tile_hw = int(tile_hw)
        assert HW % tile_hw == 0 and tile_hw % 8 == 0, \
            "tile_hw must be a multiple of 8 dividing H*W"
        out = _call_tiled(x_flat, kparams, H, W, tile_hw, cap, w_bytes)
    return out.reshape(B, H, W, C2)


# -----------------------------------------------------------------------------
# Parameters, BN/pool folding, pure-JAX reference.
# -----------------------------------------------------------------------------
def init_params(key, inplanes, planes, reduction=16, eps=1e-5):
    """Deterministic synthetic parameters (shapes follow the PyTorch module)."""
    C2 = planes * 4
    hidden = max(C2 // reduction, 1)
    ks = jax.random.split(key, 8)

    w1_t = jax.random.normal(ks[0], (planes, inplanes, 1, 1), jnp.float32) * 0.1
    w2_t = jax.random.normal(ks[1], (planes, planes, 3, 3), jnp.float32) * 0.1
    w3_t = jax.random.normal(ks[2], (C2, planes, 1, 1), jnp.float32) * 0.1
    fc1_t = jax.random.normal(ks[3], (hidden, C2), jnp.float32) * 0.1
    fc2_t = jax.random.normal(ks[4], (C2, hidden), jnp.float32) * 0.1

    def bn(k, c):
        k1, k2, k3, k4 = jax.random.split(k, 4)
        gamma = jax.random.uniform(k1, (c,), jnp.float32, 0.5, 1.5)
        beta = jax.random.normal(k2, (c,), jnp.float32) * 0.1
        mean = jax.random.normal(k3, (c,), jnp.float32) * 0.1
        var = jax.random.uniform(k4, (c,), jnp.float32, 0.5, 1.5)
        scale = gamma / jnp.sqrt(var + eps)      # inference-mode BN fold
        bias = beta - mean * scale
        return scale.reshape(1, c), bias.reshape(1, c)

    s1, b1 = bn(ks[5], planes)
    s2, b2 = bn(ks[6], planes)
    s3, b3 = bn(ks[7], C2)

    return dict(
        w1=jnp.transpose(w1_t[:, :, 0, 0]),        # (Cin, P)
        w2=jnp.transpose(w2_t, (2, 3, 1, 0)),      # (3, 3, Pin, Pout) HWIO
        w3=jnp.transpose(w3_t[:, :, 0, 0]),        # (P, C2)
        wse1=jnp.transpose(fc1_t),                 # (C2, hidden)
        wse2=jnp.transpose(fc2_t),                 # (hidden, C2)
        s1=s1, b1=b1, s2=s2, b2=b2, s3=s3, b3=b3,
    )


def fold_params(p, hw):
    """Fold inference-mode BN scales into the conv-weight columns, fold the SE
    global-avg-pool's 1/HW into the first SE FC weight, and cast all MXU
    operands to bf16 (biases stay f32).  conv2 weight is flattened to
    (9*Pin, Pout) in (ky, kx, cin) order to match the in-kernel im2col slab."""
    pin, pout = p["w2"].shape[2], p["w2"].shape[3]
    w1 = (p["w1"] * p["s1"]).astype(jnp.bfloat16)
    w2 = (p["w2"] * p["s2"].reshape(1, 1, 1, pout)).reshape(9 * pin, pout)
    w2 = w2.astype(jnp.bfloat16)
    w3 = (p["w3"] * p["s3"]).astype(jnp.bfloat16)
    wse1 = (p["wse1"] * (1.0 / hw)).astype(jnp.bfloat16)
    return dict(w1=w1, b1=p["b1"], w2=w2, b2=p["b2"], w3=w3, b3=p["b3"],
                wse1=wse1, wse2=p["wse2"].astype(jnp.bfloat16))


def ref_forward(x_nhwc, kparams):
    """Pure-JAX f32 reference using the same bf16-rounded folded weights, so
    the comparison only measures in-kernel rounding."""
    f32 = lambda a: a.astype(jnp.float32)
    pin = kparams["w1"].shape[1]
    w2_hwio = f32(kparams["w2"]).reshape(3, 3, pin, pin)

    y = jax.nn.relu(jnp.einsum("bhwc,cd->bhwd", x_nhwc, f32(kparams["w1"]))
                    + kparams["b1"].reshape(1, 1, 1, -1))
    y = lax.conv_general_dilated(y, w2_hwio, (1, 1), "SAME",
                                 dimension_numbers=("NHWC", "HWIO", "NHWC"))
    y = jax.nn.relu(y + kparams["b2"].reshape(1, 1, 1, -1))
    z = (jnp.einsum("bhwc,cd->bhwd", y, f32(kparams["w3"]))
         + kparams["b3"].reshape(1, 1, 1, -1))
    pooled = z.sum(axis=(1, 2))                   # 1/HW is folded into wse1
    h = jax.nn.relu(pooled @ f32(kparams["wse1"]))
    gate = jax.nn.sigmoid(h @ f32(kparams["wse2"]))
    z = z * gate[:, None, None, :]
    return jax.nn.relu(z + x_nhwc)


if __name__ == "__main__":
    key = jax.random.PRNGKey(0)
    kx, kp = jax.random.split(key)

    B, planes, H, W = 2, 8, 8, 8
    inplanes = planes * 4            # downsample=None -> residual adds directly
    reduction = 16                   # SE hidden = (planes*4)//16 = 2

    x_nchw = jax.random.normal(kx, (B, inplanes, H, W), jnp.float32)
    x_nhwc = jnp.transpose(x_nchw, (0, 2, 3, 1))          # NCHW -> NHWC glue
    x_bf16 = x_nhwc.astype(jnp.bfloat16)                  # kernel I/O is bf16

    params = init_params(kp, inplanes, planes, reduction=reduction)
    kparams = fold_params(params, H * W)
    ref = np.asarray(ref_forward(x_bf16.astype(jnp.float32), kparams))

    # Fused whole-image path (also what auto-selection picks at this size).
    out_fused = jax.block_until_ready(se_bottleneck(x_bf16, kparams, tile_hw=0))
    np.testing.assert_allclose(np.asarray(out_fused, dtype=np.float32), ref,
                               rtol=3e-2, atol=3e-2)

    # Two-pass HW-tiled path (forced small tile to exercise halo handling).
    out_tiled = jax.block_until_ready(se_bottleneck(x_bf16, kparams, tile_hw=32))
    np.testing.assert_allclose(np.asarray(out_tiled, dtype=np.float32), ref,
                               rtol=3e-2, atol=3e-2)

    print("KERNEL_OK")
</pallas_src>

<mosaic_0001>
module attributes {stable_mosaic.version = 11 : i64} {
  func.func @_se_fused_kernel(%arg0: i32, %arg1: memref<1x64x32xbf16, #tpu.memory_space<vmem>>, %arg2: memref<32x8xbf16, #tpu.memory_space<vmem>>, %arg3: memref<1x8xf32, #tpu.memory_space<vmem>>, %arg4: memref<72x8xbf16, #tpu.memory_space<vmem>>, %arg5: memref<1x8xf32, #tpu.memory_space<vmem>>, %arg6: memref<8x32xbf16, #tpu.memory_space<vmem>>, %arg7: memref<1x32xf32, #tpu.memory_space<vmem>>, %arg8: memref<32x2xbf16, #tpu.memory_space<vmem>>, %arg9: memref<2x32xbf16, #tpu.memory_space<vmem>>, %arg10: memref<1x64x32xbf16, #tpu.memory_space<vmem>>) attributes {dimension_semantics = [#tpu.dimension_semantics<parallel>], iteration_bounds = array<i64: 2>, scalar_prefetch = 0 : i64, scratch_operands = 0 : i64, tpu.core_type = #tpu.core_type<tc>, window_params = [{transform_indices = @transform_0, window_bounds = array<i64: 1, 64, 32>}, {pipeline_mode = #tpu.pipeline_mode<synchronous>, transform_indices = @transform_1, window_bounds = array<i64: 32, 8>}, {pipeline_mode = #tpu.pipeline_mode<synchronous>, transform_indices = @transform_2, window_bounds = array<i64: 1, 8>}, {pipeline_mode = #tpu.pipeline_mode<synchronous>, transform_indices = @transform_3, window_bounds = array<i64: 72, 8>}, {pipeline_mode = #tpu.pipeline_mode<synchronous>, transform_indices = @transform_4, window_bounds = array<i64: 1, 8>}, {pipeline_mode = #tpu.pipeline_mode<synchronous>, transform_indices = @transform_5, window_bounds = array<i64: 8, 32>}, {pipeline_mode = #tpu.pipeline_mode<synchronous>, transform_indices = @transform_6, window_bounds = array<i64: 1, 32>}, {pipeline_mode = #tpu.pipeline_mode<synchronous>, transform_indices = @transform_7, window_bounds = array<i64: 32, 2>}, {pipeline_mode = #tpu.pipeline_mode<synchronous>, transform_indices = @transform_8, window_bounds = array<i64: 2, 32>}, {transform_indices = @transform_9, window_bounds = array<i64: 1, 64, 32>}]} {
    %c0 = arith.constant 0 : index
    %c0_0 = arith.constant 0 : index
    %c0_1 = arith.constant 0 : index
    %0 = vector.load %arg1[%c0, %c0_0, %c0_1] : memref<1x64x32xbf16, #tpu.memory_space<vmem>>, vector<1x64x32xbf16>
    %1 = vector.shape_cast %0 : vector<1x64x32xbf16> to vector<64x32xbf16>
    %c0_2 = arith.constant 0 : index
    %c0_3 = arith.constant 0 : index
    %2 = vector.load %arg2[%c0_2, %c0_3] : memref<32x8xbf16, #tpu.memory_space<vmem>>, vector<32x8xbf16>
    %cst = arith.constant dense<0.000000e+00> : vector<64x8xf32>
    %3 = tpu.matmul %1, %2, %cst {dimension_numbers = #tpu.dot_dimension_numbers<[1], [0], [0], [1], [0, 0, 1, 1], [], []>} : vector<64x32xbf16>, vector<32x8xbf16>, vector<64x8xf32> -> vector<64x8xf32>
    %c0_4 = arith.constant 0 : index
    %c0_5 = arith.constant 0 : index
    %4 = vector.load %arg3[%c0_4, %c0_5] : memref<1x8xf32, #tpu.memory_space<vmem>>, vector<1x8xf32>
    %5 = vector.broadcast %4 : vector<1x8xf32> to vector<64x8xf32>
    %6 = arith.addf %3, %5 : vector<64x8xf32>
    %cst_6 = arith.constant 0.000000e+00 : f32
    %7 = vector.broadcast %cst_6 : f32 to vector<64x8xf32>
    %8 = arith.maximumf %6, %7 : vector<64x8xf32>
    %9 = arith.truncf %8 : vector<64x8xf32> to vector<64x8xbf16>
    %cst_7 = arith.constant 0.000000e+00 : bf16
    %10 = vector.broadcast %cst_7 : bf16 to vector<9x8xbf16>
    %11 = tpu.concatenate %10, %9, %10 in 0 : vector<9x8xbf16>, vector<64x8xbf16>, vector<9x8xbf16> -> vector<82x8xbf16>
    %c0_8 = arith.constant 0 : index
    %c0_9 = arith.constant 0 : index
    %12 = vector.load %arg4[%c0_8, %c0_9] : memref<72x8xbf16, #tpu.memory_space<vmem>>, vector<72x8xbf16>
    %c0_10 = arith.constant 0 : index
    %c0_11 = arith.constant 0 : index
    %13 = vector.load %arg5[%c0_10, %c0_11] : memref<1x8xf32, #tpu.memory_space<vmem>>, vector<1x8xf32>
    %c0_12 = arith.constant 0 : index
    %c0_13 = arith.constant 0 : index
    %14 = vector.load %arg6[%c0_12, %c0_13] : memref<8x32xbf16, #tpu.memory_space<vmem>>, vector<8x32xbf16>
    %c0_14 = arith.constant 0 : index
    %c0_15 = arith.constant 0 : index
    %15 = vector.load %arg7[%c0_14, %c0_15] : memref<1x32xf32, #tpu.memory_space<vmem>>, vector<1x32xf32>
    %16 = tpu.iota {dimensions = array<i32: 0>} : vector<82x1xi32>
    %c-9_i32 = arith.constant -9 : i32
    %17 = vector.broadcast %c-9_i32 : i32 to vector<82x1xi32>
    %18 = arith.addi %16, %17 : vector<82x1xi32>
    %c8_i32 = arith.constant 8 : i32
    %c0_i32 = arith.constant 0 : i32
    %19 = arith.cmpi eq, %c8_i32, %c0_i32 : i32
    %c1_i32 = arith.constant 1 : i32
    %20 = arith.select %19, %c1_i32, %c8_i32 : i32
    %21 = vector.broadcast %20 : i32 to vector<82x1xi32>
    %22 = arith.remsi %18, %21 : vector<82x1xi32>
    %c0_i32_16 = arith.constant 0 : i32
    %23 = vector.broadcast %c0_i32_16 : i32 to vector<82x1xi32>
    %24 = arith.cmpi ne, %22, %23 : vector<82x1xi32>
    %c0_i32_17 = arith.constant 0 : i32
    %25 = vector.broadcast %c0_i32_17 : i32 to vector<82x1xi32>
    %26 = arith.cmpi slt, %22, %25 : vector<82x1xi32>
    %c0_i32_18 = arith.constant 0 : i32
    %27 = arith.cmpi slt, %20, %c0_i32_18 : i32
    %28 = vector.broadcast %27 : i1 to vector<82x1xi1>
    %29 = vector.broadcast %28 : vector<82x1xi1> to vector<82x1xi1>
    %30 = arith.xori %26, %29 : vector<82x1xi1>
    %31 = arith.andi %30, %24 : vector<82x1xi1>
    %32 = vector.broadcast %20 : i32 to vector<82x1xi32>
    %33 = arith.addi %22, %32 : vector<82x1xi32>
    %34 = arith.select %31, %33, %22 : vector<82x1xi1>, vector<82x1xi32>
    %c7_i32 = arith.constant 7 : i32
    %35 = vector.broadcast %c7_i32 : i32 to vector<82x1xi32>
    %36 = arith.cmpi ne, %34, %35 : vector<82x1xi32>
    %cst_19 = arith.constant 0.000000e+00 : bf16
    %37 = vector.shape_cast %36 : vector<82x1xi1> to vector<82x1xi1>
    %38 = vector.broadcast %37 : vector<82x1xi1> to vector<82x8xi1>
    %39 = vector.broadcast %cst_19 : bf16 to vector<82x8xbf16>
    %40 = arith.select %38, %11, %39 : vector<82x8xi1>, vector<82x8xbf16>
    %c0_i32_20 = arith.constant 0 : i32
    %41 = vector.broadcast %c0_i32_20 : i32 to vector<82x1xi32>
    %42 = arith.cmpi ne, %34, %41 : vector<82x1xi32>
    %cst_21 = arith.constant 0.000000e+00 : bf16
    %43 = vector.shape_cast %42 : vector<82x1xi1> to vector<82x1xi1>
    %44 = vector.broadcast %43 : vector<82x1xi1> to vector<82x8xi1>
    %45 = vector.broadcast %cst_21 : bf16 to vector<82x8xbf16>
    %46 = arith.select %44, %11, %45 : vector<82x8xi1>, vector<82x8xbf16>
    %47 = vector.extract_strided_slice %40 {offsets = [0, 0], sizes = [64, 8], strides = [1, 1]} : vector<82x8xbf16> to vector<64x8xbf16>
    %48 = vector.extract_strided_slice %11 {offsets = [1, 0], sizes = [64, 8], strides = [1, 1]} : vector<82x8xbf16> to vector<64x8xbf16>
    %49 = vector.extract_strided_slice %46 {offsets = [2, 0], sizes = [64, 8], strides = [1, 1]} : vector<82x8xbf16> to vector<64x8xbf16>
    %50 = vector.extract_strided_slice %40 {offsets = [8, 0], sizes = [64, 8], strides = [1, 1]} : vector<82x8xbf16> to vector<64x8xbf16>
    %51 = vector.extract_strided_slice %11 {offsets = [9, 0], sizes = [64, 8], strides = [1, 1]} : vector<82x8xbf16> to vector<64x8xbf16>
    %52 = vector.extract_strided_slice %46 {offsets = [10, 0], sizes = [64, 8], strides = [1, 1]} : vector<82x8xbf16> to vector<64x8xbf16>
    %53 = vector.extract_strided_slice %40 {offsets = [16, 0], sizes = [64, 8], strides = [1, 1]} : vector<82x8xbf16> to vector<64x8xbf16>
    %54 = vector.extract_strided_slice %11 {offsets = [17, 0], sizes = [64, 8], strides = [1, 1]} : vector<82x8xbf16> to vector<64x8xbf16>
    %55 = vector.extract_strided_slice %46 {offsets = [18, 0], sizes = [64, 8], strides = [1, 1]} : vector<82x8xbf16> to vector<64x8xbf16>
    %56 = tpu.concatenate %47, %48, %49, %50, %51, %52, %53, %54, %55 in 1 : vector<64x8xbf16>, vector<64x8xbf16>, vector<64x8xbf16>, vector<64x8xbf16>, vector<64x8xbf16>, vector<64x8xbf16>, vector<64x8xbf16>, vector<64x8xbf16>, vector<64x8xbf16> -> vector<64x72xbf16>
    %cst_22 = arith.constant dense<0.000000e+00> : vector<64x8xf32>
    %57 = tpu.matmul %56, %12, %cst_22 {dimension_numbers = #tpu.dot_dimension_numbers<[1], [0], [0], [1], [0, 0, 1, 1], [], []>} : vector<64x72xbf16>, vector<72x8xbf16>, vector<64x8xf32> -> vector<64x8xf32>
    %58 = vector.broadcast %13 : vector<1x8xf32> to vector<64x8xf32>
    %59 = arith.addf %57, %58 : vector<64x8xf32>
    %cst_23 = arith.constant 0.000000e+00 : f32
    %60 = vector.broadcast %cst_23 : f32 to vector<64x8xf32>
    %61 = arith.maximumf %59, %60 : vector<64x8xf32>
    %62 = arith.truncf %61 : vector<64x8xf32> to vector<64x8xbf16>
    %cst_24 = arith.constant dense<0.000000e+00> : vector<64x32xf32>
    %63 = tpu.matmul %62, %14, %cst_24 {dimension_numbers = #tpu.dot_dimension_numbers<[1], [0], [0], [1], [0, 0, 1, 1], [], []>} : vector<64x8xbf16>, vector<8x32xbf16>, vector<64x32xf32> -> vector<64x32xf32>
    %64 = vector.broadcast %15 : vector<1x32xf32> to vector<64x32xf32>
    %65 = arith.addf %63, %64 : vector<64x32xf32>
    %cst_25 = arith.constant dense<0.000000e+00> : vector<32xf32>
    %66 = vector.multi_reduction <add>, %65, %cst_25 [0] : vector<64x32xf32> to vector<32xf32>
    %67 = vector.shape_cast %66 : vector<32xf32> to vector<1x32xf32>
    %68 = arith.truncf %67 : vector<1x32xf32> to vector<1x32xbf16>
    %c0_26 = arith.constant 0 : index
    %c0_27 = arith.constant 0 : index
    %69 = vector.load %arg8[%c0_26, %c0_27] : memref<32x2xbf16, #tpu.memory_space<vmem>>, vector<32x2xbf16>
    %cst_28 = arith.constant dense<0.000000e+00> : vector<1x2xf32>
    %70 = tpu.matmul %68, %69, %cst_28 {dimension_numbers = #tpu.dot_dimension_numbers<[1], [0], [0], [1], [0, 0, 1, 1], [], []>} : vector<1x32xbf16>, vector<32x2xbf16>, vector<1x2xf32> -> vector<1x2xf32>
    %cst_29 = arith.constant 0.000000e+00 : f32
    %71 = vector.broadcast %cst_29 : f32 to vector<1x2xf32>
    %72 = arith.maximumf %70, %71 : vector<1x2xf32>
    %73 = arith.truncf %72 : vector<1x2xf32> to vector<1x2xbf16>
    %c0_30 = arith.constant 0 : index
    %c0_31 = arith.constant 0 : index
    %74 = vector.load %arg9[%c0_30, %c0_31] : memref<2x32xbf16, #tpu.memory_space<vmem>>, vector<2x32xbf16>
    %cst_32 = arith.constant dense<0.000000e+00> : vector<1x32xf32>
    %75 = tpu.matmul %73, %74, %cst_32 {dimension_numbers = #tpu.dot_dimension_numbers<[1], [0], [0], [1], [0, 0, 1, 1], [], []>} : vector<1x2xbf16>, vector<2x32xbf16>, vector<1x32xf32> -> vector<1x32xf32>
    %76 = arith.negf %75 : vector<1x32xf32>
    %77 = math.exp %76 : vector<1x32xf32>
    %cst_33 = arith.constant 1.000000e+00 : f32
    %78 = vector.broadcast %cst_33 : f32 to vector<1x32xf32>
    %79 = arith.addf %78, %77 : vector<1x32xf32>
    %80 = arith.divf %78, %79 : vector<1x32xf32>
    %81 = vector.broadcast %80 : vector<1x32xf32> to vector<64x32xf32>
    %82 = arith.mulf %65, %81 : vector<64x32xf32>
    %83 = arith.extf %1 : vector<64x32xbf16> to vector<64x32xf32>
    %84 = arith.addf %82, %83 : vector<64x32xf32>
    %cst_34 = arith.constant 0.000000e+00 : f32
    %85 = vector.broadcast %cst_34 : f32 to vector<64x32xf32>
    %86 = arith.maximumf %84, %85 : vector<64x32xf32>
    %87 = arith.truncf %86 : vector<64x32xf32> to vector<64x32xbf16>
    %c0_35 = arith.constant 0 : index
    %c0_36 = arith.constant 0 : index
    %c0_37 = arith.constant 0 : index
    %88 = vector.load %arg10[%c0_35, %c0_36, %c0_37] : memref<1x64x32xbf16, #tpu.memory_space<vmem>>, vector<1x64x32xbf16>
    %89 = vector.shape_cast %88 : vector<1x64x32xbf16> to vector<64x32xbf16>
    %90 = vector.shape_cast %87 : vector<64x32xbf16> to vector<1x64x32xbf16>
    tpu.vector_store %arg10[%c0_35, %c0_36, %c0_37], %90 {strides = array<i32>} : memref<1x64x32xbf16, #tpu.memory_space<vmem>>, vector<1x64x32xbf16>,
    return
  }
  func.func @transform_0(%arg0: i32) -> (i32, i32, i32) {
    %c0_i32 = arith.constant 0 : i32
    %c0_i32_0 = arith.constant 0 : i32
    %c0_i32_1 = arith.constant 0 : i32
    return %arg0, %c0_i32, %c0_i32_0 : i32, i32, i32
  }
  func.func @transform_1(%arg0: i32) -> (i32, i32) {
    %c0_i32 = arith.constant 0 : i32
    %c0_i32_0 = arith.constant 0 : i32
    %c0_i32_1 = arith.constant 0 : i32
    return %c0_i32, %c0_i32_0 : i32, i32
  }
  func.func @transform_2(%arg0: i32) -> (i32, i32) {
    %c0_i32 = arith.constant 0 : i32
    %c0_i32_0 = arith.constant 0 : i32
    %c0_i32_1 = arith.constant 0 : i32
    return %c0_i32, %c0_i32_0 : i32, i32
  }
  func.func @transform_3(%arg0: i32) -> (i32, i32) {
    %c0_i32 = arith.constant 0 : i32
    %c0_i32_0 = arith.constant 0 : i32
    %c0_i32_1 = arith.constant 0 : i32
    return %c0_i32, %c0_i32_0 : i32, i32
  }
  func.func @transform_4(%arg0: i32) -> (i32, i32) {
    %c0_i32 = arith.constant 0 : i32
    %c0_i32_0 = arith.constant 0 : i32
    %c0_i32_1 = arith.constant 0 : i32
    return %c0_i32, %c0_i32_0 : i32, i32
  }
  func.func @transform_5(%arg0: i32) -> (i32, i32) {
    %c0_i32 = arith.constant 0 : i32
    %c0_i32_0 = arith.constant 0 : i32
    %c0_i32_1 = arith.constant 0 : i32
    return %c0_i32, %c0_i32_0 : i32, i32
  }
  func.func @transform_6(%arg0: i32) -> (i32, i32) {
    %c0_i32 = arith.constant 0 : i32
    %c0_i32_0 = arith.constant 0 : i32
    %c0_i32_1 = arith.constant 0 : i32
    return %c0_i32, %c0_i32_0 : i32, i32
  }
  func.func @transform_7(%arg0: i32) -> (i32, i32) {
    %c0_i32 = arith.constant 0 : i32
    %c0_i32_0 = arith.constant 0 : i32
    %c0_i32_1 = arith.constant 0 : i32
    return %c0_i32, %c0_i32_0 : i32, i32
  }
  func.func @transform_8(%arg0: i32) -> (i32, i32) {
    %c0_i32 = arith.constant 0 : i32
    %c0_i32_0 = arith.constant 0 : i32
    %c0_i32_1 = arith.constant 0 : i32
    return %c0_i32, %c0_i32_0 : i32, i32
  }
  func.func @transform_9(%arg0: i32) -> (i32, i32, i32) {
    %c0_i32 = arith.constant 0 : i32
    %c0_i32_0 = arith.constant 0 : i32
    %c0_i32_1 = arith.constant 0 : i32
    return %arg0, %c0_i32, %c0_i32_0 : i32, i32, i32
  }
}

</mosaic_0001>

<llo_original>
// kernel: tpu_custom_call.1
$region0: #{tpu_custom_call.1}
  #allocation0 [shape = 'u32[]', space=smem, size = 0x4, offset = 0x4, fixed_abs, tag = 'smem constant byte address 0x4 - core index']
  #allocation1 [shape = 'u32[72,128]{1,0:T(1,128)}', space=vmem, size = 0x9000, scoped, tag = 'internal scratch']
  %s0 = inlined_call_operand.vmem [shape: bf16[2,64,32], index: 0, kind: input, shape index: {}]
  %s1 = inlined_call_operand.vmem [shape: bf16[32,8], index: 1, kind: input, shape index: {}]
  %s2 = inlined_call_operand.vmem [shape: f32[1,8], index: 2, kind: input, shape index: {}]
  %s3 = inlined_call_operand.vmem [shape: bf16[72,8], index: 3, kind: input, shape index: {}]
  %s4 = inlined_call_operand.vmem [shape: f32[1,8], index: 4, kind: input, shape index: {}]
  %s5 = inlined_call_operand.vmem [shape: bf16[8,32], index: 5, kind: input, shape index: {}]
  %s6 = inlined_call_operand.vmem [shape: f32[1,32], index: 6, kind: input, shape index: {}]
  %s7 = inlined_call_operand.vmem [shape: bf16[32,2], index: 7, kind: input, shape index: {}]
  %s8 = inlined_call_operand.vmem [shape: bf16[2,32], index: 8, kind: input, shape index: {}]
  %s9 = inlined_call_operand.vmem [shape: bf16[2,64,32], index: 9, kind: output, shape index: {}]
  %s10 = sld [smem:[#allocation0]]
  $region69: #{tpu_custom_call.1} parent=0
    _
  %s12 = ssub.s32 1, %s10
  %s13 = scalar_select 0, %s12, %s10
  loop: start=0, step=1, limit=4
  $region2: #{tpu_custom_call.1} parent=0 // loop_pre_header
    _
  $region3: #{tpu_custom_call.1} parent=0 // loop_header
    %s15 = sphi 0, %s19
    %p16 = scmp.ge.s32.totalorder %s15, 4
    %s25 = sphi 0, %s27
    %s28 = sphi 0, %s25
    %s29 = sphi 0, %s28
    %s45 = sphi 0, %s29
    %s49 = sphi 0, %s49
    %s51 = sphi 0, %s49
    %s52 = sphi 0, %s51
    %s66 = sphi 0, %s52
    %s70 = sphi 0, %s70
    %s72 = sphi 0, %s70
    %s73 = sphi 0, %s72
    %s87 = sphi 0, %s73
    %s91 = sphi 0, %s91
    %s93 = sphi 0, %s91
    %s94 = sphi 0, %s93
    %s108 = sphi 0, %s94
    %s112 = sphi 0, %s112
    %s114 = sphi 0, %s112
    %s115 = sphi 0, %s114
    %s129 = sphi 0, %s115
    %s133 = sphi 0, %s133
    %s135 = sphi 0, %s133
    %s136 = sphi 0, %s135
    %s150 = sphi 0, %s136
    %s154 = sphi 0, %s154
    %s156 = sphi 0, %s154
    %s157 = sphi 0, %s156
    %s171 = sphi 0, %s157
    %s175 = sphi 0, %s175
    %s177 = sphi 0, %s175
    %s178 = sphi 0, %s177
    %s192 = sphi 0, %s178
    %s196 = sphi 0, %s196
    %s198 = sphi 0, %s196
    %s199 = sphi 0, %s198
    %s213 = sphi 0, %s199
    %s219 = sphi 0, %s221
    %s222 = sphi 0, %s219
    %s223 = sphi 0, %s222
    %s239 = sphi 0, %s223
  $region4: #{tpu_custom_call.1} parent=0 // loop_header_branch
    %18 = sbr.rel (%p16) target = $region8
  $region5: #{tpu_custom_call.1} parent=0 // loop_body
    %s20 = ssub.s32 %s15, 1
    %s21 = ssub.s32 %s15, 2
    %s22 = sadd.s32 %s15, 1
    %s23 = ssub.s32 %s15, %s22
    %p24 = scmp.eq.s32.totalorder %s23, 0
    %s26 = sadd.s32 %s25, 1
    %s27 = scalar_select %p24, %s25, %s26
    %p30 = pneg %p24
    %p31 = scmp.eq.s32.totalorder %s15, 1
    %p32 = por %p30, %p31
    %p33 = scmp.ne.s32.totalorder %s25, %s28
    %p34 = scmp.eq.s32.totalorder %s15, 0
    %p35 = por %p33, %p34
    %p36 = scmp.ne.s32.totalorder %s25, %s28
    %p37 = scmp.eq.s32.totalorder %s20, 1
    %p38 = por %p36, %p37
    %p39 = scmp.ne.s32.totalorder %s28, %s29
    %p40 = scmp.eq.s32.totalorder %s20, 0
    %p41 = por %p39, %p40
    %p42 = scmp.ne.s32.totalorder %s28, %s29
    %p43 = scmp.eq.s32.totalorder %s21, 1
    %p44 = por %p42, %p43
    %p46 = scmp.ne.s32.totalorder %s29, %s45
    %p47 = scmp.eq.s32.totalorder %s21, 0
    %p48 = por %p46, %p47
    %s50 = sadd.s32 %s49, 1
    %p53 = scmp.eq.s32.totalorder %s15, 1
    %p54 = scmp.ne.s32.totalorder %s49, %s51
    %p55 = scmp.eq.s32.totalorder %s15, 0
    %p56 = por %p54, %p55
    %p57 = scmp.ne.s32.totalorder %s49, %s51
    %p58 = scmp.eq.s32.totalorder %s20, 1
    %p59 = por %p57, %p58
    %p60 = scmp.ne.s32.totalorder %s51, %s52
    %p61 = scmp.eq.s32.totalorder %s20, 0
    %p62 = por %p60, %p61
    %p63 = scmp.ne.s32.totalorder %s51, %s52
    %p64 = scmp.eq.s32.totalorder %s21, 1
    %p65 = por %p63, %p64
    %p67 = scmp.ne.s32.totalorder %s52, %s66
    %p68 = scmp.eq.s32.totalorder %s21, 0
    %p69 = por %p67, %p68
    %s71 = sadd.s32 %s70, 1
    %p74 = scmp.eq.s32.totalorder %s15, 1
    %p75 = scmp.ne.s32.totalorder %s70, %s72
    %p76 = scmp.eq.s32.totalorder %s15, 0
    %p77 = por %p75, %p76
    %p78 = scmp.ne.s32.totalorder %s70, %s72
    %p79 = scmp.eq.s32.totalorder %s20, 1
    %p80 = por %p78, %p79
    %p81 = scmp.ne.s32.totalorder %s72, %s73
    %p82 = scmp.eq.s32.totalorder %s20, 0
    %p83 = por %p81, %p82
    %p84 = scmp.ne.s32.totalorder %s72, %s73
    %p85 = scmp.eq.s32.totalorder %s21, 1
    %p86 = por %p84, %p85
    %p88 = scmp.ne.s32.totalorder %s73, %s87
    %p89 = scmp.eq.s32.totalorder %s21, 0
    %p90 = por %p88, %p89
    %s92 = sadd.s32 %s91, 1
    %p95 = scmp.eq.s32.totalorder %s15, 1
    %p96 = scmp.ne.s32.totalorder %s91, %s93
    %p97 = scmp.eq.s32.totalorder %s15, 0
    %p98 = por %p96, %p97
    %p99 = scmp.ne.s32.totalorder %s91, %s93
    %p100 = scmp.eq.s32.totalorder %s20, 1
    %p101 = por %p99, %p100
    %p102 = scmp.ne.s32.totalorder %s93, %s94
    %p103 = scmp.eq.s32.totalorder %s20, 0
    %p104 = por %p102, %p103
    %p105 = scmp.ne.s32.totalorder %s93, %s94
    %p106 = scmp.eq.s32.totalorder %s21, 1
    %p107 = por %p105, %p106
    %p109 = scmp.ne.s32.totalorder %s94, %s108
    %p110 = scmp.eq.s32.totalorder %s21, 0
    %p111 = por %p109, %p110
    %s113 = sadd.s32 %s112, 1
    %p116 = scmp.eq.s32.totalorder %s15, 1
    %p117 = scmp.ne.s32.totalorder %s112, %s114
    %p118 = scmp.eq.s32.totalorder %s15, 0
    %p119 = por %p117, %p118
    %p120 = scmp.ne.s32.totalorder %s112, %s114
    %p121 = scmp.eq.s32.totalorder %s20, 1
    %p122 = por %p120, %p121
    %p123 = scmp.ne.s32.totalorder %s114, %s115
    %p124 = scmp.eq.s32.totalorder %s20, 0
    %p125 = por %p123, %p124
    %p126 = scmp.ne.s32.totalorder %s114, %s115
    %p127 = scmp.eq.s32.totalorder %s21, 1
    %p128 = por %p126, %p127
    %p130 = scmp.ne.s32.totalorder %s115, %s129
    %p131 = scmp.eq.s32.totalorder %s21, 0
    %p132 = por %p130, %p131
    %s134 = sadd.s32 %s133, 1
    %p137 = scmp.eq.s32.totalorder %s15, 1
    %p138 = scmp.ne.s32.totalorder %s133, %s135
    %p139 = scmp.eq.s32.totalorder %s15, 0
    %p140 = por %p138, %p139
    %p141 = scmp.ne.s32.totalorder %s133, %s135
    %p142 = scmp.eq.s32.totalorder %s20, 1
    %p143 = por %p141, %p142
    %p144 = scmp.ne.s32.totalorder %s135, %s136
    %p145 = scmp.eq.s32.totalorder %s20, 0
    %p146 = por %p144, %p145
    %p147 = scmp.ne.s32.totalorder %s135, %s136
    %p148 = scmp.eq.s32.totalorder %s21, 1
    %p149 = por %p147, %p148
    %p151 = scmp.ne.s32.totalorder %s136, %s150
    %p152 = scmp.eq.s32.totalorder %s21, 0
    %p153 = por %p151, %p152
    %s155 = sadd.s32 %s154, 1
    %p158 = scmp.eq.s32.totalorder %s15, 1
    %p159 = scmp.ne.s32.totalorder %s154, %s156
    %p160 = scmp.eq.s32.totalorder %s15, 0
    %p161 = por %p159, %p160
    %p162 = scmp.ne.s32.totalorder %s154, %s156
    %p163 = scmp.eq.s32.totalorder %s20, 1
    %p164 = por %p162, %p163
    %p165 = scmp.ne.s32.totalorder %s156, %s157
    %p166 = scmp.eq.s32.totalorder %s20, 0
    %p167 = por %p165, %p166
    %p168 = scmp.ne.s32.totalorder %s156, %s157
    %p169 = scmp.eq.s32.totalorder %s21, 1
    %p170 = por %p168, %p169
    %p172 = scmp.ne.s32.totalorder %s157, %s171
    %p173 = scmp.eq.s32.totalorder %s21, 0
    %p174 = por %p172, %p173
    %s176 = sadd.s32 %s175, 1
    %p179 = scmp.eq.s32.totalorder %s15, 1
    %p180 = scmp.ne.s32.totalorder %s175, %s177
    %p181 = scmp.eq.s32.totalorder %s15, 0
    %p182 = por %p180, %p181
    %p183 = scmp.ne.s32.totalorder %s175, %s177
    %p184 = scmp.eq.s32.totalorder %s20, 1
    %p185 = por %p183, %p184
    %p186 = scmp.ne.s32.totalorder %s177, %s178
    %p187 = scmp.eq.s32.totalorder %s20, 0
    %p188 = por %p186, %p187
    %p189 = scmp.ne.s32.totalorder %s177, %s178
    %p190 = scmp.eq.s32.totalorder %s21, 1
    %p191 = por %p189, %p190
    %p193 = scmp.ne.s32.totalorder %s178, %s192
    %p194 = scmp.eq.s32.totalorder %s21, 0
    %p195 = por %p193, %p194
    %s197 = sadd.s32 %s196, 1
    %p200 = scmp.eq.s32.totalorder %s15, 1
    %p201 = scmp.ne.s32.totalorder %s196, %s198
    %p202 = scmp.eq.s32.totalorder %s15, 0
    %p203 = por %p201, %p202
    %p204 = scmp.ne.s32.totalorder %s196, %s198
    %p205 = scmp.eq.s32.totalorder %s20, 1
    %p206 = por %p204, %p205
    %p207 = scmp.ne.s32.totalorder %s198, %s199
    %p208 = scmp.eq.s32.totalorder %s20, 0
    %p209 = por %p207, %p208
    %p210 = scmp.ne.s32.totalorder %s198, %s199
    %p211 = scmp.eq.s32.totalorder %s21, 1
    %p212 = por %p210, %p211
    %p214 = scmp.ne.s32.totalorder %s199, %s213
    %p215 = scmp.eq.s32.totalorder %s21, 0
    %p216 = por %p214, %p215
    %s217 = ssub.s32 %s15, %s22
    %p218 = scmp.eq.s32.totalorder %s217, 0
    %s220 = sadd.s32 %s219, 1
    %s221 = scalar_select %p218, %s219, %s220
    %p224 = pneg %p218
    %p225 = scmp.eq.s32.totalorder %s15, 1
    %p226 = por %p224, %p225
    %p227 = scmp.ne.s32.totalorder %s219, %s222
    %p228 = scmp.eq.s32.totalorder %s15, 0
    %p229 = por %p227, %p228
    %p230 = scmp.ne.s32.totalorder %s219, %s222
    %p231 = scmp.eq.s32.totalorder %s20, 1
    %p232 = por %p230, %p231
    %p233 = scmp.ne.s32.totalorder %s222, %s223
    %p234 = scmp.eq.s32.totalorder %s20, 0
    %p235 = por %p233, %p234
    %p236 = scmp.ne.s32.totalorder %s222, %s223
    %p237 = scmp.eq.s32.totalorder %s21, 1
    %p238 = por %p236, %p237
    %p240 = scmp.ne.s32.totalorder %s223, %s239
    %p241 = scmp.eq.s32.totalorder %s21, 0
    %p242 = por %p240, %p241
    %p243 = scmp.le.s32.totalorder 1, %s15
    %p244 = scmp.lt.s32.totalorder %s15, 3
    %p245 = pnand %p243, %p244
    %p246 = pneg %p245
    // Predicated region
    $region9: #{tpu_custom_call.1} parent=5 // pred_check
      _
    $region10: #{tpu_custom_call.1} parent=5 // pred_check_branch
      %248 = sbr.rel (%p245) target = $region12
    $region11: #{tpu_custom_call.1} parent=5 // pred_region
      %s249 = ssub.s32 %s15, 1
      // Predicated region
      $region13: #{tpu_custom_call.1} parent=11 // pred_check
        %p250 = pneg %p62
      $region14: #{tpu_custom_call.1} parent=11 // pred_check_branch
        %252 = sbr.rel (%p250) target = $region16
      $region15: #{tpu_custom_call.1} parent=11 // pred_region
        _
      $region16: #{tpu_custom_call.1} parent=11 // pred_fallthru
        _
      // Predicated region
      $region17: #{tpu_custom_call.1} parent=11 // pred_check
        %p253 = pneg %p83
      $region18: #{tpu_custom_call.1} parent=11 // pred_check_branch
        %255 = sbr.rel (%p253) target = $region20
      $region19: #{tpu_custom_call.1} parent=11 // pred_region
        _
      $region20: #{tpu_custom_call.1} parent=11 // pred_fallthru
        _
      // Predicated region
      $region21: #{tpu_custom_call.1} parent=11 // pred_check
        %p256 = pneg %p104
      $region22: #{tpu_custom_call.1} parent=11 // pred_check_branch
        %258 = sbr.rel (%p256) target = $region24
      $region23: #{tpu_custom_call.1} parent=11 // pred_region
        _
      $region24: #{tpu_custom_call.1} parent=11 // pred_fallthru
        _
      // Predicated region
      $region25: #{tpu_custom_call.1} parent=11 // pred_check
        %p259 = pneg %p125
      $region26: #{tpu_custom_call.1} parent=11 // pred_check_branch
        %261 = sbr.rel (%p259) target = $region28
      $region27: #{tpu_custom_call.1} parent=11 // pred_region
        _
      $region28: #{tpu_custom_call.1} parent=11 // pred_fallthru
        _
      // Predicated region
      $region29: #{tpu_custom_call.1} parent=11 // pred_check
        %p262 = pneg %p146
      $region30: #{tpu_custom_call.1} parent=11 // pred_check_branch
        %264 = sbr.rel (%p262) target = $region32
      $region31: #{tpu_custom_call.1} parent=11 // pred_region
        _
      $region32: #{tpu_custom_call.1} parent=11 // pred_fallthru
        _
      // Predicated region
      $region33: #{tpu_custom_call.1} parent=11 // pred_check
        %p265 = pneg %p167
      $region34: #{tpu_custom_call.1} parent=11 // pred_check_branch
        %267 = sbr.rel (%p265) target = $region36
      $region35: #{tpu_custom_call.1} parent=11 // pred_region
        _
      $region36: #{tpu_custom_call.1} parent=11 // pred_fallthru
        _
      // Predicated region
      $region37: #{tpu_custom_call.1} parent=11 // pred_check
        %p268 = pneg %p188
      $region38: #{tpu_custom_call.1} parent=11 // pred_check_branch
        %270 = sbr.rel (%p268) target = $region40
      $region39: #{tpu_custom_call.1} parent=11 // pred_region
        _
      $region40: #{tpu_custom_call.1} parent=11 // pred_fallthru
        _
      // Predicated region
      $region41: #{tpu_custom_call.1} parent=11 // pred_check
        %p271 = pneg %p209
      $region42: #{tpu_custom_call.1} parent=11 // pred_check_branch
        %273 = sbr.rel (%p271) target = $region44
      $region43: #{tpu_custom_call.1} parent=11 // pred_region
        _
      $region44: #{tpu_custom_call.1} parent=11 // pred_fallthru
        _
    $region12: #{tpu_custom_call.1} parent=5 // pred_fallthru
      _
    %p274 = scmp.lt.s32.totalorder %s15, 2
    // Predicated region
    $region45: #{tpu_custom_call.1} parent=5 // pred_check
      %p275 = pneg %p274
    $region46: #{tpu_custom_call.1} parent=5 // pred_check_branch
      %277 = sbr.rel (%p275) target = $region48
    $region47: #{tpu_custom_call.1} parent=5 // pred_region
      // Predicated region
      $region49: #{tpu_custom_call.1} parent=47 // pred_check
        %p278 = pneg %p35
      $region50: #{tpu_custom_call.1} parent=47 // pred_check_branch
        %280 = sbr.rel (%p278) target = $region52
      $region51: #{tpu_custom_call.1} parent=47 // pred_region
        %p281 = scmp.lt.s32.totalorder %s15, 1
        %s282 = scalar_select %p281, %s15, 1
        %s283 = smul.addr %s282, 8
        %s284 = smul.addr %s283, 4
        %s285 = scalar_lea.vmem %s0, %s284
      $region52: #{tpu_custom_call.1} parent=47 // pred_fallthru
        _
    $region48: #{tpu_custom_call.1} parent=5 // pred_fallthru
      _
    %p286 = scmp.le.s32.totalorder 1, %s15
    %p287 = scmp.lt.s32.totalorder %s15, 3
    %p288 = pnand %p286, %p287
    %p289 = pneg %p288
    // Predicated region
    $region53: #{tpu_custom_call.1} parent=5 // pred_check
      _
    $region54: #{tpu_custom_call.1} parent=5 // pred_check_branch
      %291 = sbr.rel (%p288) target = $region56
    $region55: #{tpu_custom_call.1} parent=5 // pred_region
      %s292 = ssub.s32 %s15, 1
      %p293 = scmp.lt.s32.totalorder %s20, 1
      %s294 = scalar_select %p293, %s20, 1
      %s295 = smul.addr %s294, 8
      %s296 = smul.addr %s295, 4
      %s297 = scalar_lea.vmem %s0, %s296
      %p298 = pneg %p41
      %p299 = pneg %p38
      %p300 = pneg %p62
      %p301 = pneg %p59
      %p302 = pneg %p83
      %p303 = pneg %p80
      %p304 = pneg %p104
      %p305 = pneg %p101
      %p306 = pneg %p125
      %p307 = pneg %p122
      %p308 = pneg %p146
      %p309 = pneg %p143
      %p310 = pneg %p167
      %p311 = pneg %p164
      %p312 = pneg %p188
      %p313 = pneg %p185
      %p314 = pneg %p209
      %p315 = pneg %p206
      %p316 = pneg %p235
      %p317 = pneg %p232
      %p318 = scmp.lt.s32.totalorder %s20, 1
      %s319 = scalar_select %p318, %s20, 1
      %s320 = smul.addr %s319, 8
      %s321 = smul.addr %s320, 4
      %s322 = scalar_lea.vmem %s9, %s321
      %p323 = scmp.lt.s32.totalorder %s20, 1
      %s324 = scalar_select %p323, %s20, 1
      %s325 = smul.addr %s324, 8
      %s326 = smul.addr %s325, 4
      %s327 = scalar_lea.vmem %s0, %s326
      %p328 = scmp.lt.s32.totalorder %s20, 1
      %s329 = scalar_select %p328, %s20, 1
      %s330 = smul.addr %s329, 8
      %s331 = smul.addr %s330, 4
      %s332 = scalar_lea.vmem %s9, %s331
      %v336 = vld [vmem:[%s327] sm:$0xf]
      %v337 = vld [vmem:[%s327 + $0x4] sm:$0xf]
      %v338 = vld [vmem:[%s327 + $0x8] sm:$0xf]
      %v339 = vld [vmem:[%s327 + $0xc] sm:$0xf]
      %v340 = vld [vmem:[%s327 + $0x10] sm:$0xf]
      %v341 = vld [vmem:[%s327 + $0x14] sm:$0xf]
      %v342 = vld [vmem:[%s327 + $0x18] sm:$0xf]
      %v343 = vld [vmem:[%s327 + $0x1c] sm:$0xf]
      %v344 = vld [vmem:[%s1] sm:$0xf]
      %v345 = vld [vmem:[%s1 + $0x4] sm:$0xf]
      %v346 = vld [vmem:[%s1 + $0x8] sm:$0xf]
      %v347 = vld [vmem:[%s1 + $0xc] sm:$0xf]
      %v348 = vld [vmem:[%s2] sm:$0x1]
      %v350 = vperm.slane %v348, 0
      %v360 = vunpack.c.l.b16 %v336
      %v361 = vunpack.c.l.b16 %v337
      %v362 = vunpack.c.l.b16 %v338
      %v363 = vunpack.c.l.b16 %v339
      %v364 = vunpack.c.l.b16 %v340
      %v365 = vunpack.c.l.b16 %v341
      %v366 = vunpack.c.l.b16 %v342
      %v367 = vunpack.c.l.b16 %v343
      %v368 = vpack.c.b16 %v361, %v360
      %v369 = vpack.c.b16 %v363, %v362
      %v370 = vpack.c.b16 %v365, %v364
      %v371 = vpack.c.b16 %v367, %v366
      %v376 = vunpack.c.l.b16 %v344
      %v377 = vunpack.c.l.b16 %v345
      %v378 = vunpack.c.l.b16 %v346
      %v379 = vunpack.c.l.b16 %v347
      %v380 = vpack.c.b16 %v377, %v376
      %v381 = vpack.c.b16 %v379, %v378
      %vm384 = vcmask 261120
      %v386 = vsel %vm384, %v368, 0
      %v389 = vsel %vm384, %v369, 0
      %v392 = vsel %vm384, %v370, 0
      %v395 = vsel %vm384, %v371, 0
      %397 = vmatpush.bf16.msra.mxu0 0
      %398 = vmatpush.bf16.msra.mxu0 0
      %399 = vmatpush.bf16.msra.mxu0 0
      %400 = vmatpush.bf16.msra.mxu0 0
      %401 = vmatpush.bf16.msra.mxu0 0
      %402 = vmatpush.bf16.msra.mxu0 0
      %403 = vmatpush.bf16.msra.mxu0 %v381
      %404 = vmatpush.bf16.msra.mxu0 %v380
      %405 = vmatmul.bf16.gmra.mxu0 %v386
      %v406 = vpop.f32.mrf.mxu0
      %v407 = vadd.f32 %v350, %v406
      %v408 = vpop.f32.mrf.mxu0
      %v409 = vadd.f32 %v350, %v408
      %410 = vmatmul.bf16.gmra.mxu0 %v389
      %v411 = vpop.f32.mrf.mxu0
      %v412 = vadd.f32 %v350, %v411
      %v413 = vpop.f32.mrf.mxu0
      %v414 = vadd.f32 %v350, %v413
      %415 = vmatmul.bf16.gmra.mxu0 %v392
      %v416 = vpop.f32.mrf.mxu0
      %v417 = vadd.f32 %v350, %v416
      %v418 = vpop.f32.mrf.mxu0
      %v419 = vadd.f32 %v350, %v418
      %420 = vmatmul.bf16.gmra.mxu0 %v395
      %v421 = vpop.f32.mrf.mxu0
      %v422 = vadd.f32 %v350, %v421
      %v423 = vpop.f32.mrf.mxu0
      %v424 = vadd.f32 %v350, %v423
      %425 = vdwg.mxu0
      %v426 = vmax.f32 %v407, 0.0
      %v427 = vmax.f32 %v409, 0.0
      %v428 = vmax.f32 %v412, 0.0
      %v429 = vmax.f32 %v414, 0.0
      %v430 = vmax.f32 %v417, 0.0
      %v431 = vmax.f32 %v419, 0.0
      %v432 = vmax.f32 %v422, 0.0
      %v433 = vmax.f32 %v424, 0.0
      %v434 = vpack.c.bf16 %v426, %v426
      %v435 = vpack.c.bf16 %v427, %v427
      %v436 = vpack.c.bf16 %v428, %v428
      %v437 = vpack.c.bf16 %v429, %v429
      %v438 = vpack.c.bf16 %v430, %v430
      %v439 = vpack.c.bf16 %v431, %v431
      %v440 = vpack.c.bf16 %v432, %v432
      %v441 = vpack.c.bf16 %v433, %v433
      %v450 = vunpack.c.l.b16 %v434
      %v451 = vunpack.c.l.b16 %v435
      %v452 = vunpack.c.l.b16 %v436
      %v453 = vunpack.c.l.b16 %v437
      %v454 = vunpack.c.l.b16 %v438
      %v455 = vunpack.c.l.b16 %v439
      %v456 = vunpack.c.l.b16 %v440
      %v457 = vunpack.c.l.b16 %v441
      %v458 = vpack.c.b16 %v451, %v450
      %v459 = vpack.c.b16 %v453, %v452
      %v460 = vpack.c.b16 %v455, %v454
      %v461 = vpack.c.b16 %v457, %v456
      %vm462 = vsmask.f32 4352
      %v464 = vshrl.u32 %v458, 16
      %v466 = vrot.slane %v464, 3
      %v467 = vshll.u32 %v458, 16
      %v469 = vrot.slane %v467, 4
      %v470 = vor.u32 %v466, %v469
      %v472 = vshrl.u32 %v459, 16
      %v474 = vrot.slane %v472, 3
      %v475 = vshll.u32 %v459, 16
      %v477 = vrot.slane %v475, 4
      %v478 = vor.u32 %v474, %v477
      %v479 = vsel %vm462, %v470, %v478
      %v481 = vshrl.u32 %v460, 16
      %v483 = vrot.slane %v481, 3
      %v484 = vshll.u32 %v460, 16
      %v486 = vrot.slane %v484, 4
      %v487 = vor.u32 %v483, %v486
      %v488 = vsel %vm462, %v478, %v487
      %v490 = vshrl.u32 %v461, 16
      %v492 = vrot.slane %v490, 3
      %v493 = vshll.u32 %v461, 16
      %v495 = vrot.slane %v493, 4
      %v496 = vor.u32 %v492, %v495
      %v497 = vsel %vm462, %v487, %v496
      %vm503 = vcmask 1044480
      %vm504 = vmand %vm503, %vm462
      %v505 = vsel %vm504, 0, %v470
      %v506 = vsel %vm504, %v496, 0
      %v507 = vld [vmem:[%s3] sm:$0xf]
      %v508 = vld [vmem:[%s3 + $0x4] sm:$0xf]
      %v509 = vld [vmem:[%s3 + $0x8] sm:$0xf]
      %v510 = vld [vmem:[%s3 + $0xc] sm:$0xf]
      %v511 = vld [vmem:[%s3 + $0x10] sm:$0xf]
      %v512 = vld [vmem:[%s3 + $0x14] sm:$0xf]
      %v513 = vld [vmem:[%s3 + $0x18] sm:$0xf]
      %v514 = vld [vmem:[%s3 + $0x1c] sm:$0xf]
      %v515 = vld [vmem:[%s3 + $0x20] sm:$0xf]
      %v516 = vld [vmem:[%s4] sm:$0x1]
      %v517 = vld [vmem:[%s5] sm:$0xf]
      %v518 = vld [vmem:[%s6] sm:$0x1]
      %v519 = vlaneseq
      %v520 = vshrl.u32 %v519, 7
      %v521 = vadd.s32 %v520, 8
      %v522 = vadd.s32 %v520, 16
      %v523 = vadd.s32 %v520, 24
      %v524 = vadd.s32 %v520, 32
      %v525 = vadd.s32 %v520, 40
      %v526 = vadd.s32 %v520, 48
      %v527 = vadd.s32 %v520, 56
      %v528 = vadd.s32 %v520, 64
      %v529 = vadd.s32 %v520, 72
      %v530 = vadd.s32 %v520, 4294967287
      %v531 = vadd.s32 %v521, 4294967287
      %v532 = vadd.s32 %v522, 4294967287
      %v533 = vadd.s32 %v523, 4294967287
      %v534 = vadd.s32 %v524, 4294967287
      %v535 = vadd.s32 %v525, 4294967287
      %v536 = vadd.s32 %v526, 4294967287
      %v537 = vadd.s32 %v527, 4294967287
      %v538 = vadd.s32 %v528, 4294967287
      %v539 = vadd.s32 %v529, 4294967287
      %vm540 = vcmp.lt.s32.totalorder %v530, 0
      %v541 = vsub.s32 0, %v530
      %v542 = vsel %vm540, %v541, %v530
      %v543 = vshrl.u32 %v542, 3
      %v544 = vand.u32 %v542, 7
      %v545 = vsub.s32 0, %v544
      %v546 = vsel %vm540, %v545, %v544
      %vm547 = vcmp.lt.s32.totalorder %v531, 0
      %v548 = vsub.s32 0, %v531
      %v549 = vsel %vm547, %v548, %v531
      %v550 = vshrl.u32 %v549, 3
      %v551 = vand.u32 %v549, 7
      %v552 = vsub.s32 0, %v551
      %v553 = vsel %vm547, %v552, %v551
      %vm554 = vcmp.lt.s32.totalorder %v532, 0
      %v555 = vsub.s32 0, %v532
      %v556 = vsel %vm554, %v555, %v532
      %v557 = vshrl.u32 %v556, 3
      %v558 = vand.u32 %v556, 7
      %v559 = vsub.s32 0, %v558
      %v560 = vsel %vm554, %v559, %v558
      %vm561 = vcmp.lt.s32.totalorder %v533, 0
      %v562 = vsub.s32 0, %v533
      %v563 = vsel %vm561, %v562, %v533
      %v564 = vshrl.u32 %v563, 3
      %v565 = vand.u32 %v563, 7
      %v566 = vsub.s32 0, %v565
      %v567 = vsel %vm561, %v566, %v565
      %vm568 = vcmp.lt.s32.totalorder %v534, 0
      %v569 = vsub.s32 0, %v534
      %v570 = vsel %vm568, %v569, %v534
      %v571 = vshrl.u32 %v570, 3
      %v572 = vand.u32 %v570, 7
      %v573 = vsub.s32 0, %v572
      %v574 = vsel %vm568, %v573, %v572
      %vm575 = vcmp.lt.s32.totalorder %v535, 0
      %v576 = vsub.s32 0, %v535
      %v577 = vsel %vm575, %v576, %v535
      %v578 = vshrl.u32 %v577, 3
      %v579 = vand.u32 %v577, 7
      %v580 = vsub.s32 0, %v579
      %v581 = vsel %vm575, %v580, %v579
      %vm582 = vcmp.lt.s32.totalorder %v536, 0
      %v583 = vsub.s32 0, %v536
      %v584 = vsel %vm582, %v583, %v536
      %v585 = vshrl.u32 %v584, 3
      %v586 = vand.u32 %v584, 7
      %v587 = vsub.s32 0, %v586
      %v588 = vsel %vm582, %v587, %v586
      %vm589 = vcmp.lt.s32.totalorder %v537, 0
      %v590 = vsub.s32 0, %v537
      %v591 = vsel %vm589, %v590, %v537
      %v592 = vshrl.u32 %v591, 3
      %v593 = vand.u32 %v591, 7
      %v594 = vsub.s32 0, %v593
      %v595 = vsel %vm589, %v594, %v593
      %vm596 = vcmp.lt.s32.totalorder %v538, 0
      %v597 = vsub.s32 0, %v538
      %v598 = vsel %vm596, %v597, %v538
      %v599 = vshrl.u32 %v598, 3
      %v600 = vand.u32 %v598, 7
      %v601 = vsub.s32 0, %v600
      %v602 = vsel %vm596, %v601, %v600
      %vm603 = vcmp.lt.s32.totalorder %v539, 0
      %v604 = vsub.s32 0, %v539
      %v605 = vsel %vm603, %v604, %v539
      %v606 = vshrl.u32 %v605, 3
      %v607 = vand.u32 %v605, 7
      %v608 = vsub.s32 0, %v607
      %v609 = vsel %vm603, %v608, %v607
      %vm610 = vcmp.ne.s32.totalorder %v546, 0
      %vm611 = vcmp.ne.s32.totalorder %v553, 0
      %vm612 = vcmp.ne.s32.totalorder %v560, 0
      %vm613 = vcmp.ne.s32.totalorder %v567, 0
      %vm614 = vcmp.ne.s32.totalorder %v574, 0
      %vm615 = vcmp.ne.s32.totalorder %v581, 0
      %vm616 = vcmp.ne.s32.totalorder %v588, 0
      %vm617 = vcmp.ne.s32.totalorder %v595, 0
      %vm618 = vcmp.ne.s32.totalorder %v602, 0
      %vm619 = vcmp.ne.s32.totalorder %v609, 0
      %vm620 = vcmp.lt.s32.totalorder %v546, 0
      %vm621 = vcmp.lt.s32.totalorder %v553, 0
      %vm622 = vcmp.lt.s32.totalorder %v560, 0
      %vm623 = vcmp.lt.s32.totalorder %v567, 0
      %vm624 = vcmp.lt.s32.totalorder %v574, 0
      %vm625 = vcmp.lt.s32.totalorder %v581, 0
      %vm626 = vcmp.lt.s32.totalorder %v588, 0
      %vm627 = vcmp.lt.s32.totalorder %v595, 0
      %vm628 = vcmp.lt.s32.totalorder %v602, 0
      %vm629 = vcmp.lt.s32.totalorder %v609, 0
      %vm630 = vmand %vm620, %vm610
      %vm631 = vmand %vm621, %vm611
      %vm632 = vmand %vm622, %vm612
      %vm633 = vmand %vm623, %vm613
      %vm634 = vmand %vm624, %vm614
      %vm635 = vmand %vm625, %vm615
      %vm636 = vmand %vm626, %vm616
      %vm637 = vmand %vm627, %vm617
      %vm638 = vmand %vm628, %vm618
      %vm639 = vmand %vm629, %vm619
      %v640 = vadd.s32 %v546, 8
      %v641 = vadd.s32 %v553, 8
      %v642 = vadd.s32 %v560, 8
      %v643 = vadd.s32 %v567, 8
      %v644 = vadd.s32 %v574, 8
      %v645 = vadd.s32 %v581, 8
      %v646 = vadd.s32 %v588, 8
      %v647 = vadd.s32 %v595, 8
      %v648 = vadd.s32 %v602, 8
      %v649 = vadd.s32 %v609, 8
      %v650 = vsel %vm630, %v640, %v546
      %v651 = vsel %vm631, %v641, %v553
      %v652 = vsel %vm632, %v642, %v560
      %v653 = vsel %vm633, %v643, %v567
      %v654 = vsel %vm634, %v644, %v574
      %v655 = vsel %vm635, %v645, %v581
      %v656 = vsel %vm636, %v646, %v588
      %v657 = vsel %vm637, %v647, %v595
      %v658 = vsel %vm638, %v648, %v602
      %v659 = vsel %vm639, %v649, %v609
      %vm660 = vcmp.ne.s32.totalorder %v650, 7
      %vm661 = vcmp.ne.s32.totalorder %v651, 7
      %vm662 = vcmp.ne.s32.totalorder %v652, 7
      %vm663 = vcmp.ne.s32.totalorder %v653, 7
      %vm664 = vcmp.ne.s32.totalorder %v654, 7
      %vm665 = vcmp.ne.s32.totalorder %v655, 7
      %vm666 = vcmp.ne.s32.totalorder %v656, 7
      %vm667 = vcmp.ne.s32.totalorder %v657, 7
      %vm668 = vcmp.ne.s32.totalorder %v658, 7
      %vm669 = vcmp.ne.s32.totalorder %v659, 7
      %v670 = vsel %vm660, 1, 0
      %v671 = vsel %vm661, 1, 0
      %v672 = vsel %vm662, 1, 0
      %v673 = vsel %vm663, 1, 0
      %v674 = vsel %vm664, 1, 0
      %v675 = vsel %vm665, 1, 0
      %v676 = vsel %vm666, 1, 0
      %v677 = vsel %vm667, 1, 0
      %v678 = vsel %vm668, 1, 0
      %v679 = vsel %vm669, 1, 0
      %vm680 = vcmp.eq.s32.totalorder %v670, 1
      %vm681 = vcmp.eq.s32.totalorder %v671, 1
      %vm682 = vcmp.eq.s32.totalorder %v672, 1
      %vm683 = vcmp.eq.s32.totalorder %v673, 1
      %vm684 = vcmp.eq.s32.totalorder %v674, 1
      %vm685 = vcmp.eq.s32.totalorder %v675, 1
      %vm686 = vcmp.eq.s32.totalorder %v676, 1
      %vm687 = vcmp.eq.s32.totalorder %v677, 1
      %vm688 = vcmp.eq.s32.totalorder %v678, 1
      %vm689 = vcmp.eq.s32.totalorder %v679, 1
      %vm690 = vmpackc.low %vm680, %vm680
      %vm691 = vmpackc.low %vm681, %vm681
      %vm692 = vmpackc.low %vm682, %vm682
      %vm693 = vmpackc.low %vm683, %vm683
      %vm694 = vmpackc.low %vm684, %vm684
      %vm695 = vmpackc.low %vm685, %vm685
      %vm696 = vmpackc.low %vm686, %vm686
      %vm697 = vmpackc.low %vm687, %vm687
      %vm698 = vmpackc.low %vm688, %vm688
      %vm699 = vmpackc.low %vm689, %vm689
      %v700 = vsel %vm690, 65537, 0
      %v701 = vsel %vm691, 65537, 0
      %v702 = vsel %vm692, 65537, 0
      %v703 = vsel %vm693, 65537, 0
      %v704 = vsel %vm694, 65537, 0
      %v705 = vsel %vm695, 65537, 0
      %v706 = vsel %vm696, 65537, 0
      %v707 = vsel %vm697, 65537, 0
      %v708 = vsel %vm698, 65537, 0
      %v709 = vsel %vm699, 65537, 0
      %v710 = vunpack.c.l.b16 %v700
      %v711 = vunpack.c.l.b16 %v701
      %v712 = vunpack.c.l.b16 %v702
      %v713 = vunpack.c.l.b16 %v703
      %v714 = vunpack.c.l.b16 %v704
      %v715 = vunpack.c.l.b16 %v705
      %v716 = vunpack.c.l.b16 %v706
      %v717 = vunpack.c.l.b16 %v707
      %v718 = vunpack.c.l.b16 %v708
      %v719 = vunpack.c.l.b16 %v709
      %v720 = vpack.c.b16 %v711, %v710
      %v721 = vpack.c.b16 %v713, %v712
      %v722 = vpack.c.b16 %v715, %v714
      %v723 = vpack.c.b16 %v717, %v716
      %v724 = vpack.c.b16 %v719, %v718
      %v725 = vunpack.c.l.b16 %v720
      %v726 = vunpack.c.h.b16 %v720
      %v727 = vunpack.c.l.b16 0
      %v728 = vunpack.c.h.b16 0
      %vm729 = vcmp.ne.s32.totalorder %v725, %v727
      %vm730 = vcmp.ne.s32.totalorder %v726, %v728
      %vm731 = vmpackc.low %vm730, %vm729
      %v732 = vunpack.c.l.b16 %v721
      %v733 = vunpack.c.h.b16 %v721
      %v734 = vunpack.c.l.b16 0
      %v735 = vunpack.c.h.b16 0
      %vm736 = vcmp.ne.s32.totalorder %v732, %v734
      %vm737 = vcmp.ne.s32.totalorder %v733, %v735
      %vm738 = vmpackc.low %vm737, %vm736
      %v739 = vunpack.c.l.b16 %v722
      %v740 = vunpack.c.h.b16 %v722
      %v741 = vunpack.c.l.b16 0
      %v742 = vunpack.c.h.b16 0
      %vm743 = vcmp.ne.s32.totalorder %v739, %v741
      %vm744 = vcmp.ne.s32.totalorder %v740, %v742
      %vm745 = vmpackc.low %vm744, %vm743
      %v746 = vunpack.c.l.b16 %v723
      %v747 = vunpack.c.h.b16 %v723
      %v748 = vunpack.c.l.b16 0
      %v749 = vunpack.c.h.b16 0
      %vm750 = vcmp.ne.s32.totalorder %v746, %v748
      %vm751 = vcmp.ne.s32.totalorder %v747, %v749
      %vm752 = vmpackc.low %vm751, %vm750
      %v753 = vunpack.c.l.b16 %v724
      %v754 = vunpack.c.h.b16 %v724
      %v755 = vunpack.c.l.b16 0
      %v756 = vunpack.c.h.b16 0
      %vm757 = vcmp.ne.s32.totalorder %v753, %v755
      %vm758 = vcmp.ne.s32.totalorder %v754, %v756
      %vm759 = vmpackc.low %vm758, %vm757
      %v760 = vsel %vm731, %v505, 0
      %v761 = vsel %vm738, %v479, 0
      %v762 = vsel %vm745, %v488, 0
      %v763 = vsel %vm752, %v497, 0
      %v764 = vsel %vm759, %v506, 0
      %vm765 = vcmp.ne.s32.totalorder %v650, 0
      %vm766 = vcmp.ne.s32.totalorder %v651, 0
      %vm767 = vcmp.ne.s32.totalorder %v652, 0
      %vm768 = vcmp.ne.s32.totalorder %v653, 0
      %vm769 = vcmp.ne.s32.totalorder %v654, 0
      %vm770 = vcmp.ne.s32.totalorder %v655, 0
      %vm771 = vcmp.ne.s32.totalorder %v656, 0
      %vm772 = vcmp.ne.s32.totalorder %v657, 0
      %vm773 = vcmp.ne.s32.totalorder %v658, 0
      %vm774 = vcmp.ne.s32.totalorder %v659, 0
      %v775 = vsel %vm765, 1, 0
      %v776 = vsel %vm766, 1, 0
      %v777 = vsel %vm767, 1, 0
      %v778 = vsel %vm768, 1, 0
      %v779 = vsel %vm769, 1, 0
      %v780 = vsel %vm770, 1, 0
      %v781 = vsel %vm771, 1, 0
      %v782 = vsel %vm772, 1, 0
      %v783 = vsel %vm773, 1, 0
      %v784 = vsel %vm774, 1, 0
      %vm785 = vcmp.eq.s32.totalorder %v775, 1
      %vm786 = vcmp.eq.s32.totalorder %v776, 1
      %vm787 = vcmp.eq.s32.totalorder %v777, 1
      %vm788 = vcmp.eq.s32.totalorder %v778, 1
      %vm789 = vcmp.eq.s32.totalorder %v779, 1
      %vm790 = vcmp.eq.s32.totalorder %v780, 1
      %vm791 = vcmp.eq.s32.totalorder %v781, 1
      %vm792 = vcmp.eq.s32.totalorder %v782, 1
      %vm793 = vcmp.eq.s32.totalorder %v783, 1
      %vm794 = vcmp.eq.s32.totalorder %v784, 1
      %vm795 = vmpackc.low %vm785, %vm785
      %vm796 = vmpackc.low %vm786, %vm786
      %vm797 = vmpackc.low %vm787, %vm787
      %vm798 = vmpackc.low %vm788, %vm788
      %vm799 = vmpackc.low %vm789, %vm789
      %vm800 = vmpackc.low %vm790, %vm790
      %vm801 = vmpackc.low %vm791, %vm791
      %vm802 = vmpackc.low %vm792, %vm792
      %vm803 = vmpackc.low %vm793, %vm793
      %vm804 = vmpackc.low %vm794, %vm794
      %v805 = vsel %vm795, 65537, 0
      %v806 = vsel %vm796, 65537, 0
      %v807 = vsel %vm797, 65537, 0
      %v808 = vsel %vm798, 65537, 0
      %v809 = vsel %vm799, 65537, 0
      %v810 = vsel %vm800, 65537, 0
      %v811 = vsel %vm801, 65537, 0
      %v812 = vsel %vm802, 65537, 0
      %v813 = vsel %vm803, 65537, 0
      %v814 = vsel %vm804, 65537, 0
      %v815 = vunpack.c.l.b16 %v805
      %v816 = vunpack.c.l.b16 %v806
      %v817 = vunpack.c.l.b16 %v807
      %v818 = vunpack.c.l.b16 %v808
      %v819 = vunpack.c.l.b16 %v809
      %v820 = vunpack.c.l.b16 %v810
      %v821 = vunpack.c.l.b16 %v811
      %v822 = vunpack.c.l.b16 %v812
      %v823 = vunpack.c.l.b16 %v813
      %v824 = vunpack.c.l.b16 %v814
      %v825 = vpack.c.b16 %v816, %v815
      %v826 = vpack.c.b16 %v818, %v817
      %v827 = vpack.c.b16 %v820, %v819
      %v828 = vpack.c.b16 %v822, %v821
      %v829 = vpack.c.b16 %v824, %v823
      %v830 = vunpack.c.l.b16 %v825
      %v831 = vunpack.c.h.b16 %v825
      %v832 = vunpack.c.l.b16 0
      %v833 = vunpack.c.h.b16 0
      %vm834 = vcmp.ne.s32.totalorder %v830, %v832
      %vm835 = vcmp.ne.s32.totalorder %v831, %v833
      %vm836 = vmpackc.low %vm835, %vm834
      %v837 = vunpack.c.l.b16 %v826
      %v838 = vunpack.c.h.b16 %v826
      %v839 = vunpack.c.l.b16 0
      %v840 = vunpack.c.h.b16 0
      %vm841 = vcmp.ne.s32.totalorder %v837, %v839
      %vm842 = vcmp.ne.s32.totalorder %v838, %v840
      %vm843 = vmpackc.low %vm842, %vm841
      %v844 = vunpack.c.l.b16 %v827
      %v845 = vunpack.c.h.b16 %v827
      %v846 = vunpack.c.l.b16 0
      %v847 = vunpack.c.h.b16 0
      %vm848 = vcmp.ne.s32.totalorder %v844, %v846
      %vm849 = vcmp.ne.s32.totalorder %v845, %v847
      %vm850 = vmpackc.low %vm849, %vm848
      %v851 = vunpack.c.l.b16 %v828
      %v852 = vunpack.c.h.b16 %v828
      %v853 = vunpack.c.l.b16 0
      %v854 = vunpack.c.h.b16 0
      %vm855 = vcmp.ne.s32.totalorder %v851, %v853
      %vm856 = vcmp.ne.s32.totalorder %v852, %v854
      %vm857 = vmpackc.low %vm856, %vm855
      %v858 = vunpack.c.l.b16 %v829
      %v859 = vunpack.c.h.b16 %v829
      %v860 = vunpack.c.l.b16 0
      %v861 = vunpack.c.h.b16 0
      %vm862 = vcmp.ne.s32.totalorder %v858, %v860
      %vm863 = vcmp.ne.s32.totalorder %v859, %v861
      %vm864 = vmpackc.low %vm863, %vm862
      %v865 = vsel %vm836, %v505, 0
      %v866 = vsel %vm843, %v479, 0
      %v867 = vsel %vm850, %v488, 0
      %v868 = vsel %vm857, %v497, 0
      %v869 = vsel %vm864, %v506, 0
      %vm870 = vsmask.f32 7424
      %v872 = vshrl.u32 %v505, 16
      %v874 = vshll.u32 %v505, 16
      %v876 = vrot.slane %v874, 1
      %v877 = vor.u32 %v872, %v876
      %v879 = vshll.u32 %v479, 16
      %v881 = vrot.slane %v879, 1
      %v882 = vsel %vm870, %v877, %v881
      %v883 = vshrl.u32 %v479, 16
      %v885 = vor.u32 %v883, %v881
      %v887 = vshll.u32 %v488, 16
      %v889 = vrot.slane %v887, 1
      %v890 = vsel %vm870, %v885, %v889
      %v891 = vshrl.u32 %v488, 16
      %v893 = vor.u32 %v891, %v889
      %v895 = vshll.u32 %v497, 16
      %v897 = vrot.slane %v895, 1
      %v898 = vsel %vm870, %v893, %v897
      %v899 = vshrl.u32 %v497, 16
      %v901 = vor.u32 %v899, %v897
      %v903 = vshll.u32 %v506, 16
      %v905 = vrot.slane %v903, 1
      %v906 = vsel %vm870, %v901, %v905
      %907 = vrot.lane.b32.xlu0 %v882, 8
      %v908 = vpop.permute.xlu0 %907
      %909 = vrot.lane.b32.xlu0 %v890, 8
      %v910 = vpop.permute.xlu0 %909
      %911 = vrot.lane.b32.xlu0 %v898, 8
      %v912 = vpop.permute.xlu0 %911
      %913 = vrot.lane.b32.xlu0 %v906, 8
      %v914 = vpop.permute.xlu0 %913
      %vm920 = vcmask 1046528
      %v921 = vrot.slane %v865, 1
      %v922 = vrot.slane %v866, 1
      %v923 = vsel %vm920, %v921, %v922
      %v924 = vrot.slane %v867, 1
      %v925 = vsel %vm920, %v922, %v924
      %v926 = vrot.slane %v868, 1
      %v927 = vsel %vm920, %v924, %v926
      %v928 = vrot.slane %v869, 1
      %v929 = vsel %vm920, %v926, %v928
      %930 = vrot.lane.b32.xlu0 %v923, 16
      %v931 = vpop.permute.xlu0 %930
      %932 = vrot.lane.b32.xlu0 %v925, 16
      %v933 = vpop.permute.xlu0 %932
      %934 = vrot.lane.b32.xlu0 %v927, 16
      %v935 = vpop.permute.xlu0 %934
      %936 = vrot.lane.b32.xlu0 %v929, 16
      %v937 = vpop.permute.xlu0 %936
      %vm943 = vcmask 1043456
      %v944 = vrot.slane %v760, 4
      %v945 = vrot.slane %v761, 4
      %v946 = vsel %vm943, %v944, %v945
      %v947 = vrot.slane %v762, 4
      %v948 = vsel %vm943, %v945, %v947
      %v949 = vrot.slane %v763, 4
      %v950 = vsel %vm943, %v947, %v949
      %v951 = vrot.slane %v764, 4
      %v952 = vsel %vm943, %v949, %v951
      %953 = vrot.lane.b32.xlu0 %v946, 24
      %v954 = vpop.permute.xlu0 %953
      %955 = vrot.lane.b32.xlu0 %v948, 24
      %v956 = vpop.permute.xlu0 %955
      %957 = vrot.lane.b32.xlu0 %v950, 24
      %v958 = vpop.permute.xlu0 %957
      %959 = vrot.lane.b32.xlu0 %v952, 24
      %v960 = vpop.permute.xlu0 %959
      %vm961 = vsmask.f32 3328
      %v962 = vrot.slane %v872, 4
      %v963 = vrot.slane %v874, 5
      %v964 = vor.u32 %v962, %v963
      %v965 = vrot.slane %v883, 4
      %v966 = vrot.slane %v879, 5
      %v967 = vor.u32 %v965, %v966
      %v968 = vsel %vm961, %v964, %v967
      %v969 = vrot.slane %v891, 4
      %v970 = vrot.slane %v887, 5
      %v971 = vor.u32 %v969, %v970
      %v972 = vsel %vm961, %v967, %v971
      %v973 = vrot.slane %v899, 4
      %v974 = vrot.slane %v895, 5
      %v975 = vor.u32 %v973, %v974
      %v976 = vsel %vm961, %v971, %v975
      %v977 = vshrl.u32 %v506, 16
      %v979 = vrot.slane %v977, 4
      %v980 = vrot.slane %v903, 5
      %v981 = vor.u32 %v979, %v980
      %v982 = vsel %vm961, %v975, %v981
      %983 = vrot.lane.b32.xlu0 %v968, 32
      %v984 = vpop.permute.xlu0 %983
      %985 = vrot.lane.b32.xlu0 %v972, 32
      %v986 = vpop.permute.xlu0 %985
      %987 = vrot.lane.b32.xlu0 %v976, 32
      %v988 = vpop.permute.xlu0 %987
      %989 = vrot.lane.b32.xlu0 %v982, 32
      %v990 = vpop.permute.xlu0 %989
      %vm991 = vcmask 1042432
      %v992 = vrot.slane %v865, 5
      %v993 = vrot.slane %v866, 5
      %v994 = vsel %vm991, %v992, %v993
      %v995 = vrot.slane %v867, 5
      %v996 = vsel %vm991, %v993, %v995
      %v997 = vrot.slane %v868, 5
      %v998 = vsel %vm991, %v995, %v997
      %v999 = vrot.slane %v869, 5
      %v1000 = vsel %vm991, %v997, %v999
      %1001 = vrot.lane.b32.xlu0 %v994, 40
      %v1002 = vpop.permute.xlu0 %1001
      %1003 = vrot.lane.b32.xlu0 %v996, 40
      %v1004 = vpop.permute.xlu0 %1003
      %1005 = vrot.lane.b32.xlu0 %v998, 40
      %v1006 = vpop.permute.xlu0 %1005
      %1007 = vrot.lane.b32.xlu0 %v1000, 40
      %v1008 = vpop.permute.xlu0 %1007
      %1009 = vrot.lane.b32.xlu0 %v761, 48
      %v1010 = vpop.permute.xlu0 %1009
      %1011 = vrot.lane.b32.xlu0 %v762, 48
      %v1012 = vpop.permute.xlu0 %1011
      %1013 = vrot.lane.b32.xlu0 %v763, 48
      %v1014 = vpop.permute.xlu0 %1013
      %1015 = vrot.lane.b32.xlu0 %v764, 48
      %v1016 = vpop.permute.xlu0 %1015
      %v1017 = vor.u32 %v977, %v905
      %v1019 = vshll.u32 0, 16
      %v1021 = vrot.slane %v1019, 1
      %v1022 = vsel %vm870, %v1017, %v1021
      %1023 = vrot.lane.b32.xlu0 %v890, 56
      %v1024 = vpop.permute.xlu0 %1023
      %1025 = vrot.lane.b32.xlu0 %v898, 56
      %v1026 = vpop.permute.xlu0 %1025
      %1027 = vrot.lane.b32.xlu0 %v906, 56
      %v1028 = vpop.permute.xlu0 %1027
      %1029 = vrot.lane.b32.xlu0 %v1022, 56
      %v1030 = vpop.permute.xlu0 %1029
      %v1032 = vrot.slane 0, 1
      %v1033 = vsel %vm920, %v928, %v1032
      %1034 = vrot.lane.b32.xlu0 %v925, 64
      %v1035 = vpop.permute.xlu0 %1034
      %1036 = vrot.lane.b32.xlu0 %v927, 64
      %v1037 = vpop.permute.xlu0 %1036
      %1038 = vrot.lane.b32.xlu0 %v929, 64
      %v1039 = vpop.permute.xlu0 %1038
      %1040 = vrot.lane.b32.xlu0 %v1033, 64
      %v1041 = vpop.permute.xlu0 %1040
      %vm1042 = vcmask 64512
      %v1045 = vsel %vm1042, %v760, %v908
      %v1048 = vsel %vm1042, %v761, %v910
      %v1051 = vsel %vm1042, %v762, %v912
      %v1054 = vsel %vm1042, %v763, %v914
      %vm1055 = vcmask 130048
      %v1057 = vsel %vm1055, %v1045, %v931
      %v1059 = vsel %vm1055, %v1048, %v933
      %v1061 = vsel %vm1055, %v1051, %v935
      %v1063 = vsel %vm1055, %v1054, %v937
      %vm1064 = vcmask 195584
      %v1066 = vsel %vm1064, %v1057, %v954
      %v1068 = vsel %vm1064, %v1059, %v956
      %v1070 = vsel %vm1064, %v1061, %v958
      %v1072 = vsel %vm1064, %v1063, %v960
      %v1074 = vsel %vm384, %v1066, %v984
      %v1076 = vsel %vm384, %v1068, %v986
      %v1078 = vsel %vm384, %v1070, %v988
      %v1080 = vsel %vm384, %v1072, %v990
      %vm1081 = vcmask 326656
      %v1083 = vsel %vm1081, %v1074, %v1002
      %v1085 = vsel %vm1081, %v1076, %v1004
      %v1087 = vsel %vm1081, %v1078, %v1006
      %v1089 = vsel %vm1081, %v1080, %v1008
      %vm1090 = vcmask 392192
      %v1092 = vsel %vm1090, %v1083, %v1010
      %v1094 = vsel %vm1090, %v1085, %v1012
      %v1096 = vsel %vm1090, %v1087, %v1014
      %v1098 = vsel %vm1090, %v1089, %v1016
      %vm1099 = vcmask 457728
      %v1101 = vsel %vm1099, %v1092, %v1024
      %v1103 = vsel %vm1099, %v1094, %v1026
      %v1105 = vsel %vm1099, %v1096, %v1028
      %v1107 = vsel %vm1099, %v1098, %v1030
      %vm1108 = vcmask 523264
      %v1110 = vsel %vm1108, %v1101, %v1035
      %v1112 = vsel %vm1108, %v1103, %v1037
      %v1114 = vsel %vm1108, %v1105, %v1039
      %v1116 = vsel %vm1108, %v1107, %v1041
      %v1118 = vperm.slane %v516, 0
      %v1129 = vunpack.c.l.b16 %v507
      %v1130 = vunpack.c.l.b16 %v508
      %v1131 = vunpack.c.l.b16 %v509
      %v1132 = vunpack.c.l.b16 %v510
      %v1133 = vunpack.c.l.b16 %v511
      %v1134 = vunpack.c.l.b16 %v512
      %v1135 = vunpack.c.l.b16 %v513
      %v1136 = vunpack.c.l.b16 %v514
      %v1137 = vunpack.c.l.b16 %v515
      %v1138 = vpack.c.b16 %v1130, %v1129
      %v1139 = vpack.c.b16 %v1132, %v1131
      %v1140 = vpack.c.b16 %v1134, %v1133
      %v1141 = vpack.c.b16 %v1136, %v1135
      %v1142 = vpack.c.b16 %v1137, %v1137
      %vm1147 = vcmask 588800
      %v1148 = vsel %vm1147, %v1110, 0
      %v1150 = vsel %vm1147, %v1112, 0
      %v1152 = vsel %vm1147, %v1114, 0
      %v1154 = vsel %vm1147, %v1116, 0
      %vm1156 = vcmask 1043456
      %v1158 = vsel %vm1156, %v1142, 0
      %1160 = vmatpush.bf16.msra.mxu0 0
      %1161 = vmatpush.bf16.msra.mxu0 0
      %1162 = vmatpush.bf16.msra.mxu0 0
      %1163 = vmatpush.bf16.msra.mxu0 %v1158
      %1164 = vmatpush.bf16.msra.mxu0 %v1141
      %1165 = vmatpush.bf16.msra.mxu0 %v1140
      %1166 = vmatpush.bf16.msra.mxu0 %v1139
      %1167 = vmatpush.bf16.msra.mxu0 %v1138
      %1168 = vmatmul.bf16.gmra.mxu0 %v1148
      %v1169 = vpop.f32.mrf.mxu0
      %v1170 = vadd.f32 %v1118, %v1169
      %v1171 = vpop.f32.mrf.mxu0
      %v1172 = vadd.f32 %v1118, %v1171
      %1173 = vmatmul.bf16.gmra.mxu0 %v1150
      %v1174 = vpop.f32.mrf.mxu0
      %v1175 = vadd.f32 %v1118, %v1174
      %v1176 = vpop.f32.mrf.mxu0
      %v1177 = vadd.f32 %v1118, %v1176
      %1178 = vmatmul.bf16.gmra.mxu0 %v1152
      %v1179 = vpop.f32.mrf.mxu0
      %v1180 = vadd.f32 %v1118, %v1179
      %v1181 = vpop.f32.mrf.mxu0
      %v1182 = vadd.f32 %v1118, %v1181
      %1183 = vmatmul.bf16.gmra.mxu0 %v1154
      %v1184 = vpop.f32.mrf.mxu0
      %v1185 = vadd.f32 %v1118, %v1184
      %v1186 = vpop.f32.mrf.mxu0
      %v1187 = vadd.f32 %v1118, %v1186
      %1188 = vdwg.mxu0
      %v1189 = vmax.f32 %v1170, 0.0
      %v1190 = vmax.f32 %v1172, 0.0
      %v1191 = vmax.f32 %v1175, 0.0
      %v1192 = vmax.f32 %v1177, 0.0
      %v1193 = vmax.f32 %v1180, 0.0
      %v1194 = vmax.f32 %v1182, 0.0
      %v1195 = vmax.f32 %v1185, 0.0
      %v1196 = vmax.f32 %v1187, 0.0
      %v1197 = vpack.c.bf16 %v1190, %v1189
      %v1198 = vpack.c.bf16 %v1192, %v1191
      %v1199 = vpack.c.bf16 %v1194, %v1193
      %v1200 = vpack.c.bf16 %v1196, %v1195
      %v1202 = vperm.slane %v518, 0
      %v1205 = vsel %vm1042, %v1197, 0
      %v1208 = vsel %vm1042, %v1198, 0
      %v1211 = vsel %vm1042, %v1199, 0
      %v1214 = vsel %vm1042, %v1200, 0
      %v1217 = vsel %vm1156, %v517, 0
      %1219 = vmatpush.bf16.msra.mxu0 0
      %1220 = vmatpush.bf16.msra.mxu0 0
      %1221 = vmatpush.bf16.msra.mxu0 0
      %1222 = vmatpush.bf16.msra.mxu0 0
      %1223 = vmatpush.bf16.msra.mxu0 0
      %1224 = vmatpush.bf16.msra.mxu0 0
      %1225 = vmatpush.bf16.msra.mxu0 0
      %1226 = vmatpush.bf16.msra.mxu0 %v1217
      %1227 = vmatmul.bf16.gmra.mxu0 %v1205
      %v1228 = vpop.f32.mrf.mxu0
      %v1229 = vadd.f32 %v1202, %v1228
      %v1230 = vpop.f32.mrf.mxu0
      %v1231 = vadd.f32 %v1202, %v1230
      %1232 = vmatmul.bf16.gmra.mxu0 %v1208
      %v1233 = vpop.f32.mrf.mxu0
      %v1234 = vadd.f32 %v1202, %v1233
      %v1235 = vpop.f32.mrf.mxu0
      %v1236 = vadd.f32 %v1202, %v1235
      %1237 = vmatmul.bf16.gmra.mxu0 %v1211
      %v1238 = vpop.f32.mrf.mxu0
      %v1239 = vadd.f32 %v1202, %v1238
      %v1240 = vpop.f32.mrf.mxu0
      %v1241 = vadd.f32 %v1202, %v1240
      %1242 = vmatmul.bf16.gmra.mxu0 %v1214
      %v1243 = vpop.f32.mrf.mxu0
      %v1244 = vadd.f32 %v1202, %v1243
      %v1245 = vpop.f32.mrf.mxu0
      %v1246 = vadd.f32 %v1202, %v1245
      %1247 = vdwg.mxu0
      %v1248 = vsel %vm384, %v1229, 0.0
      %v1249 = vsel %vm384, %v1231, 0.0
      %v1250 = vadd.f32 %v1248, %v1249
      %v1251 = vsel %vm384, %v1234, 0.0
      %v1252 = vadd.f32 %v1250, %v1251
      %v1253 = vsel %vm384, %v1236, 0.0
      %v1254 = vadd.f32 %v1252, %v1253
      %v1255 = vsel %vm384, %v1239, 0.0
      %v1256 = vadd.f32 %v1254, %v1255
      %v1257 = vsel %vm384, %v1241, 0.0
      %v1258 = vadd.f32 %v1256, %v1257
      %v1259 = vsel %vm384, %v1244, 0.0
      %v1260 = vadd.f32 %v1258, %v1259
      %v1261 = vsel %vm384, %v1246, 0.0
      %v1262 = vadd.f32 %v1260, %v1261
      %v1263 = vrot.slane %v1262, 4
      %v1264 = vadd.f32 %v1262, %v1263
      %v1265 = vrot.slane %v1264, 2
      %v1266 = vadd.f32 %v1264, %v1265
      %v1267 = vrot.slane %v1266, 1
      %v1268 = vadd.f32 %v1266, %v1267
      %v1269 = vpack.c.bf16 %v1268, %v1268
      %v1270 = vld [vmem:[%s7] sm:$0xf]
      %v1271 = vld [vmem:[%s7 + $0x4] sm:$0xf]
      %v1272 = vld [vmem:[%s7 + $0x8] sm:$0xf]
      %v1273 = vld [vmem:[%s7 + $0xc] sm:$0xf]
      %v1278 = vunpack.c.l.b16 %v1270
      %v1279 = vunpack.c.l.b16 %v1271
      %v1280 = vunpack.c.l.b16 %v1272
      %v1281 = vunpack.c.l.b16 %v1273
      %v1282 = vpack.c.b16 %v1279, %v1278
      %v1283 = vpack.c.b16 %v1281, %v1280
      %v1287 = vsel %vm384, %v1269, 0
      %1289 = vmatpush.bf16.msra.mxu0 0
      %1290 = vmatpush.bf16.msra.mxu0 0
      %1291 = vmatpush.bf16.msra.mxu0 0
      %1292 = vmatpush.bf16.msra.mxu0 0
      %1293 = vmatpush.bf16.msra.mxu0 0
      %1294 = vmatpush.bf16.msra.mxu0 0
      %1295 = vmatpush.bf16.msra.mxu0 %v1283
      %1296 = vmatpush.bf16.msra.mxu0 %v1282
      %1297 = vmatmul.bf16.gmra.mxu0 %v1287
      %v1298 = vpop.f32.mrf.mxu0
      %v1299 = vadd.f32 0.0, %v1298
      %v1300 = vpop.f32.mrf.mxu0
      %1301 = vdwg.mxu0
      %v1302 = vmax.f32 %v1299, 0.0
      %v1303 = vpack.c.bf16 %v1302, %v1302
      %v1304 = vld [vmem:[%s8] sm:$0x1]
      %vm1305 = vcmask 15360
      %v1307 = vsel %vm1305, %v1303, 0
      %vm1309 = vcmask 1040384
      %v1311 = vsel %vm1309, %v1304, 0
      %1313 = vmatpush.bf16.msra.mxu0 0
      %1314 = vmatpush.bf16.msra.mxu0 0
      %1315 = vmatpush.bf16.msra.mxu0 0
      %1316 = vmatpush.bf16.msra.mxu0 0
      %1317 = vmatpush.bf16.msra.mxu0 0
      %1318 = vmatpush.bf16.msra.mxu0 0
      %1319 = vmatpush.bf16.msra.mxu0 0
      %1320 = vmatpush.bf16.msra.mxu0 %v1311
      %1321 = vmatmul.bf16.gmra.mxu0 %v1307
      %v1322 = vpop.f32.mrf.mxu0
      %v1323 = vadd.f32 0.0, %v1322
      %v1324 = vpop.f32.mrf.mxu0
      %1325 = vdwg.mxu0
      %v1326 = vxor.u32 %v1323, 2147483648
      %v1327 = vmul.f32 %v1326, 1.442695
      %v1328 = vpow.pop %v1327
      %v1329 = vadd.f32 %v1328, 1.0
      %v1330 = vrcp.pop %v1329
      %v1331 = vmul.f32 %v1329, %v1330
      %v1332 = vsub.f32 1.0, %v1331
      %v1333 = vmul.f32 %v1330, %v1332
      %v1334 = vadd.f32 %v1330, %v1333
      %vm1335 = vweird.f32 %v1329
      %vm1336 = vweird.f32 %v1330
      %vm1337 = vmor %vm1335, %vm1336
      %v1338 = vsel %vm1337, %v1330, %v1334
      %v1339 = vand.u32 2147483647, %v1329
      %vm1340 = vcmp.eq.f32.partialorder %v1339, 8.507059e+37
      %v1341 = vand.u32 %v1329, 2147483648
      %v1342 = vor.u32 1.1754944e-38, %v1341
      %v1343 = vsel %vm1340, %v1342, %v1338
      %v1344 = vmul.f32 1.0, %v1343
      %v1345 = vperm.slane %v1344, 0
      %v1346 = vmul.f32 %v1229, %v1345
      %v1347 = vmul.f32 %v1231, %v1345
      %v1348 = vmul.f32 %v1234, %v1345
      %v1349 = vmul.f32 %v1236, %v1345
      %v1350 = vmul.f32 %v1239, %v1345
      %v1351 = vmul.f32 %v1241, %v1345
      %v1352 = vmul.f32 %v1244, %v1345
      %v1353 = vmul.f32 %v1246, %v1345
      %v1354 = vunpack.c.l.bf16 %v336
      %v1355 = vunpack.c.l.bf16 %v337
      %v1356 = vunpack.c.l.bf16 %v338
      %v1357 = vunpack.c.l.bf16 %v339
      %v1358 = vunpack.c.l.bf16 %v340
      %v1359 = vunpack.c.l.bf16 %v341
      %v1360 = vunpack.c.l.bf16 %v342
      %v1361 = vunpack.c.l.bf16 %v343
      %v1362 = vadd.f32 %v1346, %v1354
      %v1363 = vadd.f32 %v1347, %v1355
      %v1364 = vadd.f32 %v1348, %v1356
      %v1365 = vadd.f32 %v1349, %v1357
      %v1366 = vadd.f32 %v1350, %v1358
      %v1367 = vadd.f32 %v1351, %v1359
      %v1368 = vadd.f32 %v1352, %v1360
      %v1369 = vadd.f32 %v1353, %v1361
      %v1370 = vmax.f32 %v1362, 0.0
      %v1371 = vmax.f32 %v1363, 0.0
      %v1372 = vmax.f32 %v1364, 0.0
      %v1373 = vmax.f32 %v1365, 0.0
      %v1374 = vmax.f32 %v1366, 0.0
      %v1375 = vmax.f32 %v1367, 0.0
      %v1376 = vmax.f32 %v1368, 0.0
      %v1377 = vmax.f32 %v1369, 0.0
      %v1378 = vpack.c.bf16 %v1370, %v1370
      %v1379 = vpack.c.bf16 %v1371, %v1371
      %v1380 = vpack.c.bf16 %v1372, %v1372
      %v1381 = vpack.c.bf16 %v1373, %v1373
      %v1382 = vpack.c.bf16 %v1374, %v1374
      %v1383 = vpack.c.bf16 %v1375, %v1375
      %v1384 = vpack.c.bf16 %v1376, %v1376
      %v1385 = vpack.c.bf16 %v1377, %v1377
      %vm1386 = vcmask 257024
      %1387 = vst.msk [vmem:[%s332] sm:$0xf] %vm1386, %v1378
      %1388 = vst.msk [vmem:[%s332 + $0x4] sm:$0xf] %vm1386, %v1379
      %1389 = vst.msk [vmem:[%s332 + $0x8] sm:$0xf] %vm1386, %v1380
      %1390 = vst.msk [vmem:[%s332 + $0xc] sm:$0xf] %vm1386, %v1381
      %1391 = vst.msk [vmem:[%s332 + $0x10] sm:$0xf] %vm1386, %v1382
      %1392 = vst.msk [vmem:[%s332 + $0x14] sm:$0xf] %vm1386, %v1383
      %1393 = vst.msk [vmem:[%s332 + $0x18] sm:$0xf] %vm1386, %v1384
      %1394 = vst.msk [vmem:[%s332 + $0x1c] sm:$0xf] %vm1386, %v1385
      %p1395 = scmp.lt.s32.totalorder %s20, 1
      %s1396 = scalar_select %p1395, %s20, 1
      %s1397 = smul.addr %s1396, 8
      %s1398 = smul.addr %s1397, 4
      %s1399 = scalar_lea.vmem %s9, %s1398
      // Predicated region
      $region57: #{tpu_custom_call.1} parent=55 // pred_check
        %p1400 = pneg %p232
      $region58: #{tpu_custom_call.1} parent=55 // pred_check_branch
        %1402 = sbr.rel (%p1400) target = $region60
      $region59: #{tpu_custom_call.1} parent=55 // pred_region
        _
      $region60: #{tpu_custom_call.1} parent=55 // pred_fallthru
        _
    $region56: #{tpu_custom_call.1} parent=5 // pred_fallthru
      _
    %p1403 = scmp.le.s32.totalorder 2, %s15
    // Predicated region
    $region61: #{tpu_custom_call.1} parent=5 // pred_check
      %p1404 = pneg %p1403
    $region62: #{tpu_custom_call.1} parent=5 // pred_check_branch
      %1406 = sbr.rel (%p1404) target = $region64
    $region63: #{tpu_custom_call.1} parent=5 // pred_region
      %s1407 = ssub.s32 %s15, 2
      // Predicated region
      $region65: #{tpu_custom_call.1} parent=63 // pred_check
        %p1408 = pneg %p238
      $region66: #{tpu_custom_call.1} parent=63 // pred_check_branch
        %1410 = sbr.rel (%p1408) target = $region68
      $region67: #{tpu_custom_call.1} parent=63 // pred_region
        %p1411 = scmp.lt.s32.totalorder %s21, 1
        %s1412 = scalar_select %p1411, %s21, 1
        %s1413 = smul.addr %s1412, 8
        %s1414 = smul.addr %s1413, 4
        %s1415 = scalar_lea.vmem %s9, %s1414
      $region68: #{tpu_custom_call.1} parent=63 // pred_fallthru
        _
    $region64: #{tpu_custom_call.1} parent=5 // pred_fallthru
      _
  $region6: #{tpu_custom_call.1} parent=0 // loop_footer
    %s19 = sadd.s32 1, %s15
  $region7: #{tpu_custom_call.1} parent=0 // loop_footer_branch
    %14 = sbr.rel target = $region3
  $region8: #{tpu_custom_call.1} parent=0 // loop_exit
    _

</llo_original>
